<compile_context>
chip_gen: v5e
topology: v5e:2x2
jax: 0.10.0
libtpu: 0.0.40
codegen_flags: <defaults>
</compile_context>

<pallas_src>
import functools

import jax
import jax.numpy as jnp
from jax.experimental import pallas as pl
from jax.experimental.pallas import tpu as pltpu


CIN = 3          # RGB input
CIN_PAD = 8      # input channels zero-padded to a sublane-friendly multiple of 8
FEATS = 8        # feature width of the stand-in DHP/EDSR-style net
SCALE = 2
CT = CIN * SCALE * SCALE   # tail conv output channels (pixel-shuffle input)


def _round_up(x, m):
    return (x + m - 1) // m * m


def _const_spec(arr):
    """Fully-resident block: whole array, constant index map."""
    zeros = (0,) * arr.ndim
    return pl.BlockSpec(arr.shape, lambda *_a, _z=zeros: _z)


# ----------------------------- Fused Pallas kernel ---------------------------

def _sr_kernel(x_ref, m_ref, hw_ref, hb_ref, b1w_ref, b1b_ref,
               b2w_ref, b2b_ref, tw_ref, tb_ref, o_ref, feat_ref,
               *, Wp, Wout, dot_dtype):
    """Head -> body(conv,relu,conv)+skip -> tail, fully fused.

    x_ref   : (CIN_PAD, Ltot) zero-padded, flattened (Wp-strided) input slab
    m_ref   : (1, Wout)       1.0 on valid output columns, 0.0 on junk columns
    *w_ref  : (Cout, 9*Cin)   tap-folded 3x3 conv weights (dot_dtype)
    *b_ref  : (Cout, 1)       f32 biases
    o_ref   : (Cout_tail, Wout) lane-dense output (Wout multiple of 128)
    feat_ref: (FEATS, Ltot)   persistent VMEM feature slab (re-embedded layers)
    """
    mask = m_ref[...]                                   # (1, Wout) f32

    def conv3x3(src_ref, w_ref, b_ref, relu):
        # One MXU matmul per conv: build (9*Cin, Wout) RHS from 9 shifted VMEM
        # windows (shift = kh*Wp + kw), concatenated along the sublane axis.
        taps = [src_ref[:, pl.ds(kh * Wp + kw, Wout)]
                for kh in range(3) for kw in range(3)]
        rhs = jnp.concatenate(taps, axis=0).astype(dot_dtype)
        z = jnp.dot(w_ref[...], rhs, preferred_element_type=jnp.float32)
        z = (z + b_ref[...]) * mask                      # zero the junk columns
        if relu:
            z = jnp.maximum(z, 0.0)
        return z                                         # (Cout, Wout) f32

    # Zero the whole scratch once per grid step: the halo/tail columns outside the
    # [Wp+1, Wp+1+Wout) embed window must be zero for the shifted tap reads.
    # (Done unconditionally — cheap, and safe under megacore grid splitting.)
    feat_ref[...] = jnp.zeros_like(feat_ref)

    h = conv3x3(x_ref, hw_ref, hb_ref, relu=False)       # head
    feat_ref[:, pl.ds(Wp + 1, Wout)] = h                 # re-embed with halo
    r = conv3x3(feat_ref, b1w_ref, b1b_ref, relu=True)   # body conv1 + relu
    feat_ref[:, pl.ds(Wp + 1, Wout)] = r
    r = conv3x3(feat_ref, b2w_ref, b2b_ref, relu=False)  # body conv2
    feat_ref[:, pl.ds(Wp + 1, Wout)] = h + r             # residual skip
    t = conv3x3(feat_ref, tw_ref, tb_ref, relu=False)    # tail conv
    o_ref[...] = t.astype(o_ref.dtype)                   # dense, lane-aligned store


# ----------------------------- Inner SR model --------------------------------

def init_params(key, c_in=3, feats=8, scale=2):
    ks = jax.random.split(key, 8)
    s = 0.05
    return {
        "head_w": jax.random.normal(ks[0], (3, 3, c_in, feats), jnp.float32) * s,
        "head_b": jax.random.normal(ks[1], (feats,), jnp.float32) * s,
        "body1_w": jax.random.normal(ks[2], (3, 3, feats, feats), jnp.float32) * s,
        "body1_b": jax.random.normal(ks[3], (feats,), jnp.float32) * s,
        "body2_w": jax.random.normal(ks[4], (3, 3, feats, feats), jnp.float32) * s,
        "body2_b": jax.random.normal(ks[5], (feats,), jnp.float32) * s,
        "tail_w": jax.random.normal(
            ks[6], (3, 3, feats, c_in * scale * scale), jnp.float32) * s,
        "tail_b": jax.random.normal(ks[7], (c_in * scale * scale,), jnp.float32) * s,
    }


def _w9(w, cin_pad, dtype):
    """(3,3,Cin,Cout) HWIO -> tap-folded (Cout, 9*cin_pad) weights.

    Column ordering matches the kernel's RHS stacking: col = (kh*3+kw)*cin_pad + c.
    """
    ci, co = w.shape[2], w.shape[3]
    wpad = jnp.pad(w, ((0, 0), (0, 0), (0, cin_pad - ci), (0, 0)))
    return jnp.transpose(wpad, (3, 0, 1, 2)).reshape(co, 9 * cin_pad).astype(dtype)


@functools.partial(jax.jit, static_argnames=("scale", "dot_dtype", "fold_batch"))
def sr_model_forward(params, x_nchw, scale=2, dot_dtype=jnp.bfloat16,
                     fold_batch=None):
    """Stand-in for module.make_model(args): small EDSR/DHP-style SR net, fully
    fused into one Pallas kernel."""
    B, c_in, H, W = x_nchw.shape
    Hp, Wp = H + 2, W + 2
    N = H * Wp                          # per-image output positions (incl. junk cols)
    Np = _round_up(N, 128)              # lane-dense per-image compute/output width
    halo = 2 * Wp + 2                   # max tap offset
    Lbuf = _round_up(Np + halo, 128)    # per-image padded-flat stride (>= Hp*Wp + 2)

    if fold_batch is None:
        # Small problems: fold the whole batch into the lane dimension, one step.
        fold_batch = B * Lbuf <= 4096

    # Host glue: zero-pad (channels -> CIN_PAD, spatial halo of 1), flatten to the
    # Wp-strided padded-flat layout, pad lanes to Lbuf.  No 9x im2col.
    xp = jnp.pad(x_nchw.astype(jnp.float32),
                 ((0, 0), (0, CIN_PAD - c_in), (1, 1), (1, 1)))      # (B,8,Hp,Wp)
    xf = jnp.pad(xp.reshape(B, CIN_PAD, Hp * Wp),
                 ((0, 0), (0, 0), (0, Lbuf - Hp * Wp)))              # (B,8,Lbuf)

    wh = _w9(params["head_w"], CIN_PAD, dot_dtype)
    w1 = _w9(params["body1_w"], FEATS, dot_dtype)
    w2 = _w9(params["body2_w"], FEATS, dot_dtype)
    wt = _w9(params["tail_w"], FEATS, dot_dtype)
    bh = params["head_b"].reshape(-1, 1).astype(jnp.float32)
    b1 = params["body1_b"].reshape(-1, 1).astype(jnp.float32)
    b2 = params["body2_b"].reshape(-1, 1).astype(jnp.float32)
    bt = params["tail_b"].reshape(-1, 1).astype(jnp.float32)
    ct = wt.shape[0]

    if fold_batch:
        # Whole batch in the lane dimension; one grid step, one weight handling.
        Wout = B * Lbuf
        Ltot = Wout + _round_up(halo, 128)
        xin = jnp.pad(jnp.transpose(xf, (1, 0, 2)).reshape(CIN_PAD, B * Lbuf),
                      ((0, 0), (0, Ltot - B * Lbuf)))
        cols = jnp.arange(Wout) % Lbuf
        grid = (1,)
        x_spec = pl.BlockSpec((CIN_PAD, Ltot), lambda b: (0, 0))
        out_shape = jax.ShapeDtypeStruct((ct, Wout), jnp.float32)
        out_spec = pl.BlockSpec((ct, Wout), lambda b: (0, 0))
    else:
        # One image per grid step ("parallel": v7x megacore splits the batch).
        Wout = Np
        Ltot = Lbuf
        xin = xf
        cols = jnp.arange(Wout)
        grid = (B,)
        x_spec = pl.BlockSpec((None, CIN_PAD, Lbuf), lambda b: (b, 0, 0))
        out_shape = jax.ShapeDtypeStruct((B, ct, Np), jnp.float32)
        out_spec = pl.BlockSpec((None, ct, Np), lambda b: (b, 0, 0))

    mask = ((cols < N) & (cols % Wp < W)).astype(jnp.float32).reshape(1, Wout)

    kernel = functools.partial(_sr_kernel, Wp=Wp, Wout=Wout, dot_dtype=dot_dtype)

    # TODO(synk): for very large images add a spatial row-tile grid axis with a
    # 1-row halo (and pl.Buffered(3) on the input spec) instead of whole-image
    # VMEM residency; raise vmem_limit_bytes further on v6e before tiling.
    t_flat = pl.pallas_call(
        kernel,
        out_shape=out_shape,
        grid=grid,
        in_specs=[
            x_spec, _const_spec(mask),
            _const_spec(wh), _const_spec(bh),
            _const_spec(w1), _const_spec(b1),
            _const_spec(w2), _const_spec(b2),
            _const_spec(wt), _const_spec(bt),
        ],
        out_specs=out_spec,
        scratch_shapes=[pltpu.VMEM((FEATS, Ltot), jnp.float32)],
        compiler_params=pltpu.CompilerParams(
            dimension_semantics=("parallel",),
            vmem_limit_bytes=32 * 1024 * 1024),
    )(xin, mask, wh, bh, w1, b1, w2, b2, wt, bt)

    # Host glue: unpack to (B, ct, H, W) — drop lane padding and junk columns.
    if fold_batch:
        t = jnp.transpose(t_flat.reshape(ct, B, Lbuf), (1, 0, 2))[:, :, :N]
    else:
        t = t_flat[:, :, :N]
    t = t.reshape(B, ct, H, Wp)[..., :W]                 # (B, CT, H, W)

    # Pixel-shuffle x`scale` (matches torch.nn.PixelShuffle ordering), already NCHW.
    r = scale
    c_out = ct // (r * r)
    y = t.reshape(B, c_out, r, r, H, W)
    y = jnp.transpose(y, (0, 1, 4, 2, 5, 3))
    return y.reshape(B, c_out, H * r, W * r)             # NCHW


# ------------------------------ Wrapper Model --------------------------------

class ModelPallas:
    """Mirrors Model.forward dispatch for the default configuration:
    self_ensemble=False, chop=False, model_flag != 'finetune', training path
    => returns self.model(x[0])."""

    def __init__(self, params, scale=(2,), self_ensemble=False, chop=False,
                 model_flag="dhp_sr", dot_dtype=jnp.bfloat16):
        self.params = params
        self.scale = scale
        self.idx_scale = 0
        self.self_ensemble = self_ensemble
        self.chop = chop
        self.model_flag = model_flag
        self.dot_dtype = dot_dtype   # MXU operand dtype (f32 accumulate either way)

    def forward(self, idx_scale, *x):
        self.idx_scale = idx_scale
        # TODO(synk): forward_x8 / forward_chop host-side ensemble & tiling paths and
        # the 'finetune' tuple-input path are not reproduced (disabled in default args).
        return sr_model_forward(self.params, x[0], scale=self.scale[idx_scale],
                                dot_dtype=self.dot_dtype)

    __call__ = forward


# ------------------------------ Reference check -------------------------------

def pixel_shuffle_nhwc(x, r):
    """Matches torch.nn.PixelShuffle channel ordering (c*r*r + i*r + j)."""
    B, H, W, C = x.shape
    Cc = C // (r * r)
    x = x.reshape(B, H, W, Cc, r, r)
    x = jnp.transpose(x, (0, 1, 4, 2, 5, 3))
    return x.reshape(B, H * r, W * r, Cc)


def _conv3x3_ref(x, w, b, apply_relu=False):
    y = jax.lax.conv_general_dilated(
        x, w, window_strides=(1, 1), padding="SAME",
        dimension_numbers=("NHWC", "HWIO", "NHWC"))
    y = y + b.reshape(1, 1, 1, -1)
    return jnp.maximum(y, 0.0) if apply_relu else y


def _sr_model_ref(params, x_nchw, scale=2):
    x = jnp.transpose(x_nchw, (0, 2, 3, 1))
    h = _conv3x3_ref(x, params["head_w"], params["head_b"])
    r = _conv3x3_ref(h, params["body1_w"], params["body1_b"], apply_relu=True)
    r = _conv3x3_ref(r, params["body2_w"], params["body2_b"])
    h = h + r
    t = _conv3x3_ref(h, params["tail_w"], params["tail_b"])
    y = pixel_shuffle_nhwc(t, scale)
    return jnp.transpose(y, (0, 3, 1, 2))


if __name__ == "__main__":
    key = jax.random.PRNGKey(0)
    kp, kx = jax.random.split(key)
    params = init_params(kp, c_in=CIN, feats=FEATS, scale=SCALE)

    x = jax.random.normal(kx, (2, 3, 16, 16), jnp.float32)  # NCHW, like PyTorch

    ref = jax.block_until_ready(_sr_model_ref(params, x, scale=2))

    # Default perf path: bf16 MXU operands, batch folded into lanes (small input).
    model = ModelPallas(params, scale=(2,))
    out = jax.block_until_ready(model.forward(0, x))
    assert out.shape == (2, 3, 32, 32), out.shape
    assert jnp.max(jnp.abs(out - ref)) < 5e-2   # bf16-operand rounding tolerance

    # Exact f32 paths (strict check), covering both layouts: batch-folded single
    # grid step and per-image batch-parallel grid.
    out_f32_fold = jax.block_until_ready(
        sr_model_forward(params, x, scale=2, dot_dtype=jnp.float32, fold_batch=True))
    out_f32_grid = jax.block_until_ready(
        sr_model_forward(params, x, scale=2, dot_dtype=jnp.float32, fold_batch=False))
    assert jnp.max(jnp.abs(out_f32_fold - ref)) < 1e-4
    assert jnp.max(jnp.abs(out_f32_grid - ref)) < 1e-4

    print("KERNEL_OK")
</pallas_src>

<mosaic_0001>
module attributes {stable_mosaic.version = 11 : i64} {
  func.func @_sr_kernel(%arg0: i32, %arg1: memref<8x1152xf32, #tpu.memory_space<vmem>>, %arg2: memref<1x1024xf32, #tpu.memory_space<vmem>>, %arg3: memref<8x72xbf16, #tpu.memory_space<vmem>>, %arg4: memref<8x1xf32, #tpu.memory_space<vmem>>, %arg5: memref<8x72xbf16, #tpu.memory_space<vmem>>, %arg6: memref<8x1xf32, #tpu.memory_space<vmem>>, %arg7: memref<8x72xbf16, #tpu.memory_space<vmem>>, %arg8: memref<8x1xf32, #tpu.memory_space<vmem>>, %arg9: memref<12x72xbf16, #tpu.memory_space<vmem>>, %arg10: memref<12x1xf32, #tpu.memory_space<vmem>>, %arg11: memref<12x1024xf32, #tpu.memory_space<vmem>>, %arg12: memref<8x1152xf32, #tpu.memory_space<vmem>>) attributes {dimension_semantics = [#tpu.dimension_semantics<parallel>], iteration_bounds = array<i64: 1>, scalar_prefetch = 0 : i64, scratch_operands = 1 : i64, tpu.core_type = #tpu.core_type<tc>, window_params = [{pipeline_mode = #tpu.pipeline_mode<synchronous>, transform_indices = @transform_0, window_bounds = array<i64: 8, 1152>}, {pipeline_mode = #tpu.pipeline_mode<synchronous>, transform_indices = @transform_1, window_bounds = array<i64: 1, 1024>}, {pipeline_mode = #tpu.pipeline_mode<synchronous>, transform_indices = @transform_2, window_bounds = array<i64: 8, 72>}, {pipeline_mode = #tpu.pipeline_mode<synchronous>, transform_indices = @transform_3, window_bounds = array<i64: 8, 1>}, {pipeline_mode = #tpu.pipeline_mode<synchronous>, transform_indices = @transform_4, window_bounds = array<i64: 8, 72>}, {pipeline_mode = #tpu.pipeline_mode<synchronous>, transform_indices = @transform_5, window_bounds = array<i64: 8, 1>}, {pipeline_mode = #tpu.pipeline_mode<synchronous>, transform_indices = @transform_6, window_bounds = array<i64: 8, 72>}, {pipeline_mode = #tpu.pipeline_mode<synchronous>, transform_indices = @transform_7, window_bounds = array<i64: 8, 1>}, {pipeline_mode = #tpu.pipeline_mode<synchronous>, transform_indices = @transform_8, window_bounds = array<i64: 12, 72>}, {pipeline_mode = #tpu.pipeline_mode<synchronous>, transform_indices = @transform_9, window_bounds = array<i64: 12, 1>}, {pipeline_mode = #tpu.pipeline_mode<synchronous>, transform_indices = @transform_10, window_bounds = array<i64: 12, 1024>}]} {
    %c0 = arith.constant 0 : index
    %c0_0 = arith.constant 0 : index
    %0 = vector.load %arg2[%c0, %c0_0] : memref<1x1024xf32, #tpu.memory_space<vmem>>, vector<1x1024xf32>
    %cst = arith.constant 0.000000e+00 : f32
    %1 = vector.broadcast %cst : f32 to vector<8x1152xf32>
    %c0_1 = arith.constant 0 : index
    %c0_2 = arith.constant 0 : index
    %2 = vector.load %arg12[%c0_1, %c0_2] : memref<8x1152xf32, #tpu.memory_space<vmem>>, vector<8x1152xf32>
    tpu.vector_store %arg12[%c0_1, %c0_2], %1 {strides = array<i32>} : memref<8x1152xf32, #tpu.memory_space<vmem>>, vector<8x1152xf32>,
    %c0_3 = arith.constant 0 : index
    %c0_4 = arith.constant 0 : index
    %3 = vector.load %arg1[%c0_3, %c0_4] : memref<8x1152xf32, #tpu.memory_space<vmem>>, vector<8x1024xf32>
    %c0_5 = arith.constant 0 : index
    %c1 = arith.constant 1 : index
    %4 = vector.load %arg1[%c0_5, %c1] : memref<8x1152xf32, #tpu.memory_space<vmem>>, vector<8x1024xf32>
    %c0_6 = arith.constant 0 : index
    %c2 = arith.constant 2 : index
    %5 = vector.load %arg1[%c0_6, %c2] : memref<8x1152xf32, #tpu.memory_space<vmem>>, vector<8x1024xf32>
    %c0_7 = arith.constant 0 : index
    %c18 = arith.constant 18 : index
    %6 = vector.load %arg1[%c0_7, %c18] : memref<8x1152xf32, #tpu.memory_space<vmem>>, vector<8x1024xf32>
    %c0_8 = arith.constant 0 : index
    %c19 = arith.constant 19 : index
    %7 = vector.load %arg1[%c0_8, %c19] : memref<8x1152xf32, #tpu.memory_space<vmem>>, vector<8x1024xf32>
    %c0_9 = arith.constant 0 : index
    %c20 = arith.constant 20 : index
    %8 = vector.load %arg1[%c0_9, %c20] : memref<8x1152xf32, #tpu.memory_space<vmem>>, vector<8x1024xf32>
    %c0_10 = arith.constant 0 : index
    %c36 = arith.constant 36 : index
    %9 = vector.load %arg1[%c0_10, %c36] : memref<8x1152xf32, #tpu.memory_space<vmem>>, vector<8x1024xf32>
    %c0_11 = arith.constant 0 : index
    %c37 = arith.constant 37 : index
    %10 = vector.load %arg1[%c0_11, %c37] : memref<8x1152xf32, #tpu.memory_space<vmem>>, vector<8x1024xf32>
    %c0_12 = arith.constant 0 : index
    %c38 = arith.constant 38 : index
    %11 = vector.load %arg1[%c0_12, %c38] : memref<8x1152xf32, #tpu.memory_space<vmem>>, vector<8x1024xf32>
    %12 = tpu.concatenate %3, %4, %5, %6, %7, %8, %9, %10, %11 in 0 : vector<8x1024xf32>, vector<8x1024xf32>, vector<8x1024xf32>, vector<8x1024xf32>, vector<8x1024xf32>, vector<8x1024xf32>, vector<8x1024xf32>, vector<8x1024xf32>, vector<8x1024xf32> -> vector<72x1024xf32>
    %13 = arith.truncf %12 : vector<72x1024xf32> to vector<72x1024xbf16>
    %c0_13 = arith.constant 0 : index
    %c0_14 = arith.constant 0 : index
    %14 = vector.load %arg3[%c0_13, %c0_14] : memref<8x72xbf16, #tpu.memory_space<vmem>>, vector<8x72xbf16>
    %cst_15 = arith.constant dense<0.000000e+00> : vector<8x1024xf32>
    %15 = tpu.matmul %14, %13, %cst_15 {dimension_numbers = #tpu.dot_dimension_numbers<[1], [0], [0], [1], [0, 0, 1, 1], [], []>} : vector<8x72xbf16>, vector<72x1024xbf16>, vector<8x1024xf32> -> vector<8x1024xf32>
    %c0_16 = arith.constant 0 : index
    %c0_17 = arith.constant 0 : index
    %16 = vector.load %arg4[%c0_16, %c0_17] : memref<8x1xf32, #tpu.memory_space<vmem>>, vector<8x1xf32>
    %17 = vector.broadcast %16 : vector<8x1xf32> to vector<8x1024xf32>
    %18 = arith.addf %15, %17 : vector<8x1024xf32>
    %19 = vector.broadcast %0 : vector<1x1024xf32> to vector<8x1024xf32>
    %20 = arith.mulf %18, %19 : vector<8x1024xf32>
    %c0_18 = arith.constant 0 : index
    %c19_19 = arith.constant 19 : index
    %21 = vector.load %arg12[%c0_18, %c19_19] : memref<8x1152xf32, #tpu.memory_space<vmem>>, vector<8x1024xf32>
    tpu.vector_store %arg12[%c0_18, %c19_19], %20 {strides = array<i32>} : memref<8x1152xf32, #tpu.memory_space<vmem>>, vector<8x1024xf32>,
    %c0_20 = arith.constant 0 : index
    %c0_21 = arith.constant 0 : index
    %22 = vector.load %arg12[%c0_20, %c0_21] : memref<8x1152xf32, #tpu.memory_space<vmem>>, vector<8x1024xf32>
    %c0_22 = arith.constant 0 : index
    %c1_23 = arith.constant 1 : index
    %23 = vector.load %arg12[%c0_22, %c1_23] : memref<8x1152xf32, #tpu.memory_space<vmem>>, vector<8x1024xf32>
    %c0_24 = arith.constant 0 : index
    %c2_25 = arith.constant 2 : index
    %24 = vector.load %arg12[%c0_24, %c2_25] : memref<8x1152xf32, #tpu.memory_space<vmem>>, vector<8x1024xf32>
    %c0_26 = arith.constant 0 : index
    %c18_27 = arith.constant 18 : index
    %25 = vector.load %arg12[%c0_26, %c18_27] : memref<8x1152xf32, #tpu.memory_space<vmem>>, vector<8x1024xf32>
    %c0_28 = arith.constant 0 : index
    %c19_29 = arith.constant 19 : index
    %26 = vector.load %arg12[%c0_28, %c19_29] : memref<8x1152xf32, #tpu.memory_space<vmem>>, vector<8x1024xf32>
    %c0_30 = arith.constant 0 : index
    %c20_31 = arith.constant 20 : index
    %27 = vector.load %arg12[%c0_30, %c20_31] : memref<8x1152xf32, #tpu.memory_space<vmem>>, vector<8x1024xf32>
    %c0_32 = arith.constant 0 : index
    %c36_33 = arith.constant 36 : index
    %28 = vector.load %arg12[%c0_32, %c36_33] : memref<8x1152xf32, #tpu.memory_space<vmem>>, vector<8x1024xf32>
    %c0_34 = arith.constant 0 : index
    %c37_35 = arith.constant 37 : index
    %29 = vector.load %arg12[%c0_34, %c37_35] : memref<8x1152xf32, #tpu.memory_space<vmem>>, vector<8x1024xf32>
    %c0_36 = arith.constant 0 : index
    %c38_37 = arith.constant 38 : index
    %30 = vector.load %arg12[%c0_36, %c38_37] : memref<8x1152xf32, #tpu.memory_space<vmem>>, vector<8x1024xf32>
    %31 = tpu.concatenate %22, %23, %24, %25, %26, %27, %28, %29, %30 in 0 : vector<8x1024xf32>, vector<8x1024xf32>, vector<8x1024xf32>, vector<8x1024xf32>, vector<8x1024xf32>, vector<8x1024xf32>, vector<8x1024xf32>, vector<8x1024xf32>, vector<8x1024xf32> -> vector<72x1024xf32>
    %32 = arith.truncf %31 : vector<72x1024xf32> to vector<72x1024xbf16>
    %c0_38 = arith.constant 0 : index
    %c0_39 = arith.constant 0 : index
    %33 = vector.load %arg5[%c0_38, %c0_39] : memref<8x72xbf16, #tpu.memory_space<vmem>>, vector<8x72xbf16>
    %cst_40 = arith.constant dense<0.000000e+00> : vector<8x1024xf32>
    %34 = tpu.matmul %33, %32, %cst_40 {dimension_numbers = #tpu.dot_dimension_numbers<[1], [0], [0], [1], [0, 0, 1, 1], [], []>} : vector<8x72xbf16>, vector<72x1024xbf16>, vector<8x1024xf32> -> vector<8x1024xf32>
    %c0_41 = arith.constant 0 : index
    %c0_42 = arith.constant 0 : index
    %35 = vector.load %arg6[%c0_41, %c0_42] : memref<8x1xf32, #tpu.memory_space<vmem>>, vector<8x1xf32>
    %36 = vector.broadcast %35 : vector<8x1xf32> to vector<8x1024xf32>
    %37 = arith.addf %34, %36 : vector<8x1024xf32>
    %38 = vector.broadcast %0 : vector<1x1024xf32> to vector<8x1024xf32>
    %39 = arith.mulf %37, %38 : vector<8x1024xf32>
    %cst_43 = arith.constant 0.000000e+00 : f32
    %40 = vector.broadcast %cst_43 : f32 to vector<8x1024xf32>
    %41 = arith.maximumf %39, %40 : vector<8x1024xf32>
    %c0_44 = arith.constant 0 : index
    %c19_45 = arith.constant 19 : index
    %42 = vector.load %arg12[%c0_44, %c19_45] : memref<8x1152xf32, #tpu.memory_space<vmem>>, vector<8x1024xf32>
    tpu.vector_store %arg12[%c0_44, %c19_45], %41 {strides = array<i32>} : memref<8x1152xf32, #tpu.memory_space<vmem>>, vector<8x1024xf32>,
    %c0_46 = arith.constant 0 : index
    %c0_47 = arith.constant 0 : index
    %43 = vector.load %arg12[%c0_46, %c0_47] : memref<8x1152xf32, #tpu.memory_space<vmem>>, vector<8x1024xf32>
    %c0_48 = arith.constant 0 : index
    %c1_49 = arith.constant 1 : index
    %44 = vector.load %arg12[%c0_48, %c1_49] : memref<8x1152xf32, #tpu.memory_space<vmem>>, vector<8x1024xf32>
    %c0_50 = arith.constant 0 : index
    %c2_51 = arith.constant 2 : index
    %45 = vector.load %arg12[%c0_50, %c2_51] : memref<8x1152xf32, #tpu.memory_space<vmem>>, vector<8x1024xf32>
    %c0_52 = arith.constant 0 : index
    %c18_53 = arith.constant 18 : index
    %46 = vector.load %arg12[%c0_52, %c18_53] : memref<8x1152xf32, #tpu.memory_space<vmem>>, vector<8x1024xf32>
    %c0_54 = arith.constant 0 : index
    %c19_55 = arith.constant 19 : index
    %47 = vector.load %arg12[%c0_54, %c19_55] : memref<8x1152xf32, #tpu.memory_space<vmem>>, vector<8x1024xf32>
    %c0_56 = arith.constant 0 : index
    %c20_57 = arith.constant 20 : index
    %48 = vector.load %arg12[%c0_56, %c20_57] : memref<8x1152xf32, #tpu.memory_space<vmem>>, vector<8x1024xf32>
    %c0_58 = arith.constant 0 : index
    %c36_59 = arith.constant 36 : index
    %49 = vector.load %arg12[%c0_58, %c36_59] : memref<8x1152xf32, #tpu.memory_space<vmem>>, vector<8x1024xf32>
    %c0_60 = arith.constant 0 : index
    %c37_61 = arith.constant 37 : index
    %50 = vector.load %arg12[%c0_60, %c37_61] : memref<8x1152xf32, #tpu.memory_space<vmem>>, vector<8x1024xf32>
    %c0_62 = arith.constant 0 : index
    %c38_63 = arith.constant 38 : index
    %51 = vector.load %arg12[%c0_62, %c38_63] : memref<8x1152xf32, #tpu.memory_space<vmem>>, vector<8x1024xf32>
    %52 = tpu.concatenate %43, %44, %45, %46, %47, %48, %49, %50, %51 in 0 : vector<8x1024xf32>, vector<8x1024xf32>, vector<8x1024xf32>, vector<8x1024xf32>, vector<8x1024xf32>, vector<8x1024xf32>, vector<8x1024xf32>, vector<8x1024xf32>, vector<8x1024xf32> -> vector<72x1024xf32>
    %53 = arith.truncf %52 : vector<72x1024xf32> to vector<72x1024xbf16>
    %c0_64 = arith.constant 0 : index
    %c0_65 = arith.constant 0 : index
    %54 = vector.load %arg7[%c0_64, %c0_65] : memref<8x72xbf16, #tpu.memory_space<vmem>>, vector<8x72xbf16>
    %cst_66 = arith.constant dense<0.000000e+00> : vector<8x1024xf32>
    %55 = tpu.matmul %54, %53, %cst_66 {dimension_numbers = #tpu.dot_dimension_numbers<[1], [0], [0], [1], [0, 0, 1, 1], [], []>} : vector<8x72xbf16>, vector<72x1024xbf16>, vector<8x1024xf32> -> vector<8x1024xf32>
    %c0_67 = arith.constant 0 : index
    %c0_68 = arith.constant 0 : index
    %56 = vector.load %arg8[%c0_67, %c0_68] : memref<8x1xf32, #tpu.memory_space<vmem>>, vector<8x1xf32>
    %57 = vector.broadcast %56 : vector<8x1xf32> to vector<8x1024xf32>
    %58 = arith.addf %55, %57 : vector<8x1024xf32>
    %59 = vector.broadcast %0 : vector<1x1024xf32> to vector<8x1024xf32>
    %60 = arith.mulf %58, %59 : vector<8x1024xf32>
    %61 = arith.addf %20, %60 : vector<8x1024xf32>
    %c0_69 = arith.constant 0 : index
    %c19_70 = arith.constant 19 : index
    %62 = vector.load %arg12[%c0_69, %c19_70] : memref<8x1152xf32, #tpu.memory_space<vmem>>, vector<8x1024xf32>
    tpu.vector_store %arg12[%c0_69, %c19_70], %61 {strides = array<i32>} : memref<8x1152xf32, #tpu.memory_space<vmem>>, vector<8x1024xf32>,
    %c0_71 = arith.constant 0 : index
    %c0_72 = arith.constant 0 : index
    %63 = vector.load %arg12[%c0_71, %c0_72] : memref<8x1152xf32, #tpu.memory_space<vmem>>, vector<8x1024xf32>
    %c0_73 = arith.constant 0 : index
    %c1_74 = arith.constant 1 : index
    %64 = vector.load %arg12[%c0_73, %c1_74] : memref<8x1152xf32, #tpu.memory_space<vmem>>, vector<8x1024xf32>
    %c0_75 = arith.constant 0 : index
    %c2_76 = arith.constant 2 : index
    %65 = vector.load %arg12[%c0_75, %c2_76] : memref<8x1152xf32, #tpu.memory_space<vmem>>, vector<8x1024xf32>
    %c0_77 = arith.constant 0 : index
    %c18_78 = arith.constant 18 : index
    %66 = vector.load %arg12[%c0_77, %c18_78] : memref<8x1152xf32, #tpu.memory_space<vmem>>, vector<8x1024xf32>
    %c0_79 = arith.constant 0 : index
    %c19_80 = arith.constant 19 : index
    %67 = vector.load %arg12[%c0_79, %c19_80] : memref<8x1152xf32, #tpu.memory_space<vmem>>, vector<8x1024xf32>
    %c0_81 = arith.constant 0 : index
    %c20_82 = arith.constant 20 : index
    %68 = vector.load %arg12[%c0_81, %c20_82] : memref<8x1152xf32, #tpu.memory_space<vmem>>, vector<8x1024xf32>
    %c0_83 = arith.constant 0 : index
    %c36_84 = arith.constant 36 : index
    %69 = vector.load %arg12[%c0_83, %c36_84] : memref<8x1152xf32, #tpu.memory_space<vmem>>, vector<8x1024xf32>
    %c0_85 = arith.constant 0 : index
    %c37_86 = arith.constant 37 : index
    %70 = vector.load %arg12[%c0_85, %c37_86] : memref<8x1152xf32, #tpu.memory_space<vmem>>, vector<8x1024xf32>
    %c0_87 = arith.constant 0 : index
    %c38_88 = arith.constant 38 : index
    %71 = vector.load %arg12[%c0_87, %c38_88] : memref<8x1152xf32, #tpu.memory_space<vmem>>, vector<8x1024xf32>
    %72 = tpu.concatenate %63, %64, %65, %66, %67, %68, %69, %70, %71 in 0 : vector<8x1024xf32>, vector<8x1024xf32>, vector<8x1024xf32>, vector<8x1024xf32>, vector<8x1024xf32>, vector<8x1024xf32>, vector<8x1024xf32>, vector<8x1024xf32>, vector<8x1024xf32> -> vector<72x1024xf32>
    %73 = arith.truncf %72 : vector<72x1024xf32> to vector<72x1024xbf16>
    %c0_89 = arith.constant 0 : index
    %c0_90 = arith.constant 0 : index
    %74 = vector.load %arg9[%c0_89, %c0_90] : memref<12x72xbf16, #tpu.memory_space<vmem>>, vector<12x72xbf16>
    %cst_91 = arith.constant dense<0.000000e+00> : vector<12x1024xf32>
    %75 = tpu.matmul %74, %73, %cst_91 {dimension_numbers = #tpu.dot_dimension_numbers<[1], [0], [0], [1], [0, 0, 1, 1], [], []>} : vector<12x72xbf16>, vector<72x1024xbf16>, vector<12x1024xf32> -> vector<12x1024xf32>
    %c0_92 = arith.constant 0 : index
    %c0_93 = arith.constant 0 : index
    %76 = vector.load %arg10[%c0_92, %c0_93] : memref<12x1xf32, #tpu.memory_space<vmem>>, vector<12x1xf32>
    %77 = vector.broadcast %76 : vector<12x1xf32> to vector<12x1024xf32>
    %78 = arith.addf %75, %77 : vector<12x1024xf32>
    %79 = vector.broadcast %0 : vector<1x1024xf32> to vector<12x1024xf32>
    %80 = arith.mulf %78, %79 : vector<12x1024xf32>
    %c0_94 = arith.constant 0 : index
    %c0_95 = arith.constant 0 : index
    %81 = vector.load %arg11[%c0_94, %c0_95] : memref<12x1024xf32, #tpu.memory_space<vmem>>, vector<12x1024xf32>
    tpu.vector_store %arg11[%c0_94, %c0_95], %80 {strides = array<i32>} : memref<12x1024xf32, #tpu.memory_space<vmem>>, vector<12x1024xf32>,
    return
  }
  func.func @transform_0(%arg0: i32) -> (i32, i32) {
    %c0_i32 = arith.constant 0 : i32
    %c0_i32_0 = arith.constant 0 : i32
    %c0_i32_1 = arith.constant 0 : i32
    return %c0_i32, %c0_i32_0 : i32, i32
  }
  func.func @transform_1(%arg0: i32) -> (i32, i32) {
    %c0_i32 = arith.constant 0 : i32
    %c0_i32_0 = arith.constant 0 : i32
    %c0_i32_1 = arith.constant 0 : i32
    return %c0_i32, %c0_i32_0 : i32, i32
  }
  func.func @transform_2(%arg0: i32) -> (i32, i32) {
    %c0_i32 = arith.constant 0 : i32
    %c0_i32_0 = arith.constant 0 : i32
    %c0_i32_1 = arith.constant 0 : i32
    return %c0_i32, %c0_i32_0 : i32, i32
  }
  func.func @transform_3(%arg0: i32) -> (i32, i32) {
    %c0_i32 = arith.constant 0 : i32
    %c0_i32_0 = arith.constant 0 : i32
    %c0_i32_1 = arith.constant 0 : i32
    return %c0_i32, %c0_i32_0 : i32, i32
  }
  func.func @transform_4(%arg0: i32) -> (i32, i32) {
    %c0_i32 = arith.constant 0 : i32
    %c0_i32_0 = arith.constant 0 : i32
    %c0_i32_1 = arith.constant 0 : i32
    return %c0_i32, %c0_i32_0 : i32, i32
  }
  func.func @transform_5(%arg0: i32) -> (i32, i32) {
    %c0_i32 = arith.constant 0 : i32
    %c0_i32_0 = arith.constant 0 : i32
    %c0_i32_1 = arith.constant 0 : i32
    return %c0_i32, %c0_i32_0 : i32, i32
  }
  func.func @transform_6(%arg0: i32) -> (i32, i32) {
    %c0_i32 = arith.constant 0 : i32
    %c0_i32_0 = arith.constant 0 : i32
    %c0_i32_1 = arith.constant 0 : i32
    return %c0_i32, %c0_i32_0 : i32, i32
  }
  func.func @transform_7(%arg0: i32) -> (i32, i32) {
    %c0_i32 = arith.constant 0 : i32
    %c0_i32_0 = arith.constant 0 : i32
    %c0_i32_1 = arith.constant 0 : i32
    return %c0_i32, %c0_i32_0 : i32, i32
  }
  func.func @transform_8(%arg0: i32) -> (i32, i32) {
    %c0_i32 = arith.constant 0 : i32
    %c0_i32_0 = arith.constant 0 : i32
    %c0_i32_1 = arith.constant 0 : i32
    return %c0_i32, %c0_i32_0 : i32, i32
  }
  func.func @transform_9(%arg0: i32) -> (i32, i32) {
    %c0_i32 = arith.constant 0 : i32
    %c0_i32_0 = arith.constant 0 : i32
    %c0_i32_1 = arith.constant 0 : i32
    return %c0_i32, %c0_i32_0 : i32, i32
  }
  func.func @transform_10(%arg0: i32) -> (i32, i32) {
    %c0_i32 = arith.constant 0 : i32
    %c0_i32_0 = arith.constant 0 : i32
    %c0_i32_1 = arith.constant 0 : i32
    return %c0_i32, %c0_i32_0 : i32, i32
  }
}

</mosaic_0001>

<llo_original>
// kernel: sr_model_forward.1
$region0: #{sr_model_forward.1}
  #allocation0 [shape = 'u32[]', space=smem, size = 0x4, offset = 0x4, fixed_abs, tag = 'smem constant byte address 0x4 - core index']
  #allocation1 [shape = 'u32[72,128]{1,0:T(1,128)}', space=vmem, size = 0x9000, scoped, tag = 'internal scratch']
  #allocation2 [shape = 'f32[8,1152]{1,0:T(8,128)}', space=vmem, size = 0x9000, scoped, tag = 'scratch operand']
  %s0 = inlined_call_operand.vmem [shape: f32[8,1152], index: 0, kind: input, shape index: {}]
  %s1 = inlined_call_operand.vmem [shape: f32[1,1024], index: 1, kind: input, shape index: {}]
  %s2 = inlined_call_operand.vmem [shape: bf16[8,72], index: 2, kind: input, shape index: {}]
  %s3 = inlined_call_operand.vmem [shape: f32[8,1], index: 3, kind: input, shape index: {}]
  %s4 = inlined_call_operand.vmem [shape: bf16[8,72], index: 4, kind: input, shape index: {}]
  %s5 = inlined_call_operand.vmem [shape: f32[8,1], index: 5, kind: input, shape index: {}]
  %s6 = inlined_call_operand.vmem [shape: bf16[8,72], index: 6, kind: input, shape index: {}]
  %s7 = inlined_call_operand.vmem [shape: f32[8,1], index: 7, kind: input, shape index: {}]
  %s8 = inlined_call_operand.vmem [shape: bf16[12,72], index: 8, kind: input, shape index: {}]
  %s9 = inlined_call_operand.vmem [shape: f32[12,1], index: 9, kind: input, shape index: {}]
  %s10 = inlined_call_operand.vmem [shape: f32[12,1024], index: 10, kind: output, shape index: {}]
  %s11 = sld [smem:[#allocation0]]
  $region50: #{sr_model_forward.1} parent=0
    _
  %s13 = ssub.s32 1, %s11
  %s14 = scalar_select 0, %s13, %s11
  // Predicated region
  $region2: #{sr_model_forward.1} parent=0 // pred_check
    _
  $region3: #{sr_model_forward.1} parent=0 // pred_check_branch
    %16 = sbr.rel (0) target = $region5
  $region4: #{sr_model_forward.1} parent=0 // pred_region
    _
  $region5: #{sr_model_forward.1} parent=0 // pred_fallthru
    _
  // Predicated region
  $region6: #{sr_model_forward.1} parent=0 // pred_check
    _
  $region7: #{sr_model_forward.1} parent=0 // pred_check_branch
    %18 = sbr.rel (0) target = $region9
  $region8: #{sr_model_forward.1} parent=0 // pred_region
    _
  $region9: #{sr_model_forward.1} parent=0 // pred_fallthru
    _
  // Predicated region
  $region10: #{sr_model_forward.1} parent=0 // pred_check
    _
  $region11: #{sr_model_forward.1} parent=0 // pred_check_branch
    %20 = sbr.rel (0) target = $region13
  $region12: #{sr_model_forward.1} parent=0 // pred_region
    _
  $region13: #{sr_model_forward.1} parent=0 // pred_fallthru
    _
  // Predicated region
  $region14: #{sr_model_forward.1} parent=0 // pred_check
    _
  $region15: #{sr_model_forward.1} parent=0 // pred_check_branch
    %22 = sbr.rel (0) target = $region17
  $region16: #{sr_model_forward.1} parent=0 // pred_region
    _
  $region17: #{sr_model_forward.1} parent=0 // pred_fallthru
    _
  // Predicated region
  $region18: #{sr_model_forward.1} parent=0 // pred_check
    _
  $region19: #{sr_model_forward.1} parent=0 // pred_check_branch
    %24 = sbr.rel (0) target = $region21
  $region20: #{sr_model_forward.1} parent=0 // pred_region
    _
  $region21: #{sr_model_forward.1} parent=0 // pred_fallthru
    _
  // Predicated region
  $region22: #{sr_model_forward.1} parent=0 // pred_check
    _
  $region23: #{sr_model_forward.1} parent=0 // pred_check_branch
    %26 = sbr.rel (0) target = $region25
  $region24: #{sr_model_forward.1} parent=0 // pred_region
    _
  $region25: #{sr_model_forward.1} parent=0 // pred_fallthru
    _
  // Predicated region
  $region26: #{sr_model_forward.1} parent=0 // pred_check
    _
  $region27: #{sr_model_forward.1} parent=0 // pred_check_branch
    %28 = sbr.rel (0) target = $region29
  $region28: #{sr_model_forward.1} parent=0 // pred_region
    _
  $region29: #{sr_model_forward.1} parent=0 // pred_fallthru
    _
  // Predicated region
  $region30: #{sr_model_forward.1} parent=0 // pred_check
    _
  $region31: #{sr_model_forward.1} parent=0 // pred_check_branch
    %30 = sbr.rel (0) target = $region33
  $region32: #{sr_model_forward.1} parent=0 // pred_region
    _
  $region33: #{sr_model_forward.1} parent=0 // pred_fallthru
    _
  // Predicated region
  $region34: #{sr_model_forward.1} parent=0 // pred_check
    _
  $region35: #{sr_model_forward.1} parent=0 // pred_check_branch
    %32 = sbr.rel (0) target = $region37
  $region36: #{sr_model_forward.1} parent=0 // pred_region
    _
  $region37: #{sr_model_forward.1} parent=0 // pred_fallthru
    _
  // Predicated region
  $region38: #{sr_model_forward.1} parent=0 // pred_check
    _
  $region39: #{sr_model_forward.1} parent=0 // pred_check_branch
    %34 = sbr.rel (0) target = $region41
  $region40: #{sr_model_forward.1} parent=0 // pred_region
    _
  $region41: #{sr_model_forward.1} parent=0 // pred_fallthru
    _
  %v36 = vld [vmem:[%s1] sm:$0xff]
  %37 = vst [vmem:[#allocation2] sm:$0xff] 0.0
  %38 = vst [vmem:[#allocation2 + $0x8] sm:$0xff] 0.0
  %39 = vst [vmem:[#allocation2 + $0x10] sm:$0xff] 0.0
  %40 = vst [vmem:[#allocation2 + $0x18] sm:$0xff] 0.0
  %41 = vst [vmem:[#allocation2 + $0x20] sm:$0xff] 0.0
  %42 = vst [vmem:[#allocation2 + $0x28] sm:$0xff] 0.0
  %43 = vst [vmem:[#allocation2 + $0x30] sm:$0xff] 0.0
  %44 = vst [vmem:[#allocation2 + $0x38] sm:$0xff] 0.0
  %45 = vst [vmem:[#allocation2 + $0x40] sm:$0xff] 0.0
  %v46 = vld [vmem:[%s0] sm:$0xff]
  %v47 = vld [vmem:[%s0 + $0x8] sm:$0xff]
  %v48 = vld [vmem:[%s0 + $0x10] sm:$0xff]
  %v49 = vld [vmem:[%s0 + $0x18] sm:$0xff]
  %v50 = vld [vmem:[%s0 + $0x20] sm:$0xff]
  %v51 = vld [vmem:[%s0 + $0x28] sm:$0xff]
  %v52 = vld [vmem:[%s0 + $0x30] sm:$0xff]
  %v53 = vld [vmem:[%s0 + $0x38] sm:$0xff]
  %v54 = vld [vmem:[%s0] sm:$0xff]
  %v55 = vld [vmem:[%s0 + $0x8] sm:$0xff]
  %v56 = vld [vmem:[%s0 + $0x10] sm:$0xff]
  %v57 = vld [vmem:[%s0 + $0x18] sm:$0xff]
  %v58 = vld [vmem:[%s0 + $0x20] sm:$0xff]
  %v59 = vld [vmem:[%s0 + $0x28] sm:$0xff]
  %v60 = vld [vmem:[%s0 + $0x30] sm:$0xff]
  %v61 = vld [vmem:[%s0 + $0x38] sm:$0xff]
  %v62 = vld [vmem:[%s0 + $0x40] sm:$0xff]
  %72 = vrot.lane.b32.xlu0 %v54, 127
  %v73 = vpop.permute.xlu0 %72
  %74 = vrot.lane.b32.xlu0 %v55, 127
  %v75 = vpop.permute.xlu0 %74
  %76 = vrot.lane.b32.xlu0 %v56, 127
  %v77 = vpop.permute.xlu0 %76
  %78 = vrot.lane.b32.xlu0 %v57, 127
  %v79 = vpop.permute.xlu0 %78
  %80 = vrot.lane.b32.xlu0 %v58, 127
  %v81 = vpop.permute.xlu0 %80
  %82 = vrot.lane.b32.xlu0 %v59, 127
  %v83 = vpop.permute.xlu0 %82
  %84 = vrot.lane.b32.xlu0 %v60, 127
  %v85 = vpop.permute.xlu0 %84
  %86 = vrot.lane.b32.xlu0 %v61, 127
  %v87 = vpop.permute.xlu0 %86
  %88 = vrot.lane.b32.xlu0 %v62, 127
  %v89 = vpop.permute.xlu0 %88
  %vm90 = vcmask 1039360
  %v91 = vsel %vm90, %v73, %v75
  %v92 = vsel %vm90, %v75, %v77
  %v93 = vsel %vm90, %v77, %v79
  %v94 = vsel %vm90, %v79, %v81
  %v95 = vsel %vm90, %v81, %v83
  %v96 = vsel %vm90, %v83, %v85
  %v97 = vsel %vm90, %v85, %v87
  %v98 = vsel %vm90, %v87, %v89
  %107 = vrot.lane.b32.xlu0 %v54, 126
  %v108 = vpop.permute.xlu0 %107
  %109 = vrot.lane.b32.xlu0 %v55, 126
  %v110 = vpop.permute.xlu0 %109
  %111 = vrot.lane.b32.xlu0 %v56, 126
  %v112 = vpop.permute.xlu0 %111
  %113 = vrot.lane.b32.xlu0 %v57, 126
  %v114 = vpop.permute.xlu0 %113
  %115 = vrot.lane.b32.xlu0 %v58, 126
  %v116 = vpop.permute.xlu0 %115
  %117 = vrot.lane.b32.xlu0 %v59, 126
  %v118 = vpop.permute.xlu0 %117
  %119 = vrot.lane.b32.xlu0 %v60, 126
  %v120 = vpop.permute.xlu0 %119
  %121 = vrot.lane.b32.xlu0 %v61, 126
  %v122 = vpop.permute.xlu0 %121
  %123 = vrot.lane.b32.xlu0 %v62, 126
  %v124 = vpop.permute.xlu0 %123
  %vm125 = vcmask 1031168
  %v126 = vsel %vm125, %v108, %v110
  %v127 = vsel %vm125, %v110, %v112
  %v128 = vsel %vm125, %v112, %v114
  %v129 = vsel %vm125, %v114, %v116
  %v130 = vsel %vm125, %v116, %v118
  %v131 = vsel %vm125, %v118, %v120
  %v132 = vsel %vm125, %v120, %v122
  %v133 = vsel %vm125, %v122, %v124
  %142 = vrot.lane.b32.xlu0 %v54, 110
  %v143 = vpop.permute.xlu0 %142
  %144 = vrot.lane.b32.xlu0 %v55, 110
  %v145 = vpop.permute.xlu0 %144
  %146 = vrot.lane.b32.xlu0 %v56, 110
  %v147 = vpop.permute.xlu0 %146
  %148 = vrot.lane.b32.xlu0 %v57, 110
  %v149 = vpop.permute.xlu0 %148
  %150 = vrot.lane.b32.xlu0 %v58, 110
  %v151 = vpop.permute.xlu0 %150
  %152 = vrot.lane.b32.xlu0 %v59, 110
  %v153 = vpop.permute.xlu0 %152
  %154 = vrot.lane.b32.xlu0 %v60, 110
  %v155 = vpop.permute.xlu0 %154
  %156 = vrot.lane.b32.xlu0 %v61, 110
  %v157 = vpop.permute.xlu0 %156
  %158 = vrot.lane.b32.xlu0 %v62, 110
  %v159 = vpop.permute.xlu0 %158
  %vm160 = vcmask 900096
  %v161 = vsel %vm160, %v143, %v145
  %v162 = vsel %vm160, %v145, %v147
  %v163 = vsel %vm160, %v147, %v149
  %v164 = vsel %vm160, %v149, %v151
  %v165 = vsel %vm160, %v151, %v153
  %v166 = vsel %vm160, %v153, %v155
  %v167 = vsel %vm160, %v155, %v157
  %v168 = vsel %vm160, %v157, %v159
  %177 = vrot.lane.b32.xlu0 %v54, 109
  %v178 = vpop.permute.xlu0 %177
  %179 = vrot.lane.b32.xlu0 %v55, 109
  %v180 = vpop.permute.xlu0 %179
  %181 = vrot.lane.b32.xlu0 %v56, 109
  %v182 = vpop.permute.xlu0 %181
  %183 = vrot.lane.b32.xlu0 %v57, 109
  %v184 = vpop.permute.xlu0 %183
  %185 = vrot.lane.b32.xlu0 %v58, 109
  %v186 = vpop.permute.xlu0 %185
  %187 = vrot.lane.b32.xlu0 %v59, 109
  %v188 = vpop.permute.xlu0 %187
  %189 = vrot.lane.b32.xlu0 %v60, 109
  %v190 = vpop.permute.xlu0 %189
  %191 = vrot.lane.b32.xlu0 %v61, 109
  %v192 = vpop.permute.xlu0 %191
  %193 = vrot.lane.b32.xlu0 %v62, 109
  %v194 = vpop.permute.xlu0 %193
  %vm195 = vcmask 891904
  %v196 = vsel %vm195, %v178, %v180
  %v197 = vsel %vm195, %v180, %v182
  %v198 = vsel %vm195, %v182, %v184
  %v199 = vsel %vm195, %v184, %v186
  %v200 = vsel %vm195, %v186, %v188
  %v201 = vsel %vm195, %v188, %v190
  %v202 = vsel %vm195, %v190, %v192
  %v203 = vsel %vm195, %v192, %v194
  %212 = vrot.lane.b32.xlu0 %v54, 108
  %v213 = vpop.permute.xlu0 %212
  %214 = vrot.lane.b32.xlu0 %v55, 108
  %v215 = vpop.permute.xlu0 %214
  %216 = vrot.lane.b32.xlu0 %v56, 108
  %v217 = vpop.permute.xlu0 %216
  %218 = vrot.lane.b32.xlu0 %v57, 108
  %v219 = vpop.permute.xlu0 %218
  %220 = vrot.lane.b32.xlu0 %v58, 108
  %v221 = vpop.permute.xlu0 %220
  %222 = vrot.lane.b32.xlu0 %v59, 108
  %v223 = vpop.permute.xlu0 %222
  %224 = vrot.lane.b32.xlu0 %v60, 108
  %v225 = vpop.permute.xlu0 %224
  %226 = vrot.lane.b32.xlu0 %v61, 108
  %v227 = vpop.permute.xlu0 %226
  %228 = vrot.lane.b32.xlu0 %v62, 108
  %v229 = vpop.permute.xlu0 %228
  %vm230 = vcmask 883712
  %v231 = vsel %vm230, %v213, %v215
  %v232 = vsel %vm230, %v215, %v217
  %v233 = vsel %vm230, %v217, %v219
  %v234 = vsel %vm230, %v219, %v221
  %v235 = vsel %vm230, %v221, %v223
  %v236 = vsel %vm230, %v223, %v225
  %v237 = vsel %vm230, %v225, %v227
  %v238 = vsel %vm230, %v227, %v229
  %247 = vrot.lane.b32.xlu0 %v54, 92
  %v248 = vpop.permute.xlu0 %247
  %249 = vrot.lane.b32.xlu0 %v55, 92
  %v250 = vpop.permute.xlu0 %249
  %251 = vrot.lane.b32.xlu0 %v56, 92
  %v252 = vpop.permute.xlu0 %251
  %253 = vrot.lane.b32.xlu0 %v57, 92
  %v254 = vpop.permute.xlu0 %253
  %255 = vrot.lane.b32.xlu0 %v58, 92
  %v256 = vpop.permute.xlu0 %255
  %257 = vrot.lane.b32.xlu0 %v59, 92
  %v258 = vpop.permute.xlu0 %257
  %259 = vrot.lane.b32.xlu0 %v60, 92
  %v260 = vpop.permute.xlu0 %259
  %261 = vrot.lane.b32.xlu0 %v61, 92
  %v262 = vpop.permute.xlu0 %261
  %263 = vrot.lane.b32.xlu0 %v62, 92
  %v264 = vpop.permute.xlu0 %263
  %vm265 = vcmask 752640
  %v266 = vsel %vm265, %v248, %v250
  %v267 = vsel %vm265, %v250, %v252
  %v268 = vsel %vm265, %v252, %v254
  %v269 = vsel %vm265, %v254, %v256
  %v270 = vsel %vm265, %v256, %v258
  %v271 = vsel %vm265, %v258, %v260
  %v272 = vsel %vm265, %v260, %v262
  %v273 = vsel %vm265, %v262, %v264
  %282 = vrot.lane.b32.xlu0 %v54, 91
  %v283 = vpop.permute.xlu0 %282
  %284 = vrot.lane.b32.xlu0 %v55, 91
  %v285 = vpop.permute.xlu0 %284
  %286 = vrot.lane.b32.xlu0 %v56, 91
  %v287 = vpop.permute.xlu0 %286
  %288 = vrot.lane.b32.xlu0 %v57, 91
  %v289 = vpop.permute.xlu0 %288
  %290 = vrot.lane.b32.xlu0 %v58, 91
  %v291 = vpop.permute.xlu0 %290
  %292 = vrot.lane.b32.xlu0 %v59, 91
  %v293 = vpop.permute.xlu0 %292
  %294 = vrot.lane.b32.xlu0 %v60, 91
  %v295 = vpop.permute.xlu0 %294
  %296 = vrot.lane.b32.xlu0 %v61, 91
  %v297 = vpop.permute.xlu0 %296
  %298 = vrot.lane.b32.xlu0 %v62, 91
  %v299 = vpop.permute.xlu0 %298
  %vm300 = vcmask 744448
  %v301 = vsel %vm300, %v283, %v285
  %v302 = vsel %vm300, %v285, %v287
  %v303 = vsel %vm300, %v287, %v289
  %v304 = vsel %vm300, %v289, %v291
  %v305 = vsel %vm300, %v291, %v293
  %v306 = vsel %vm300, %v293, %v295
  %v307 = vsel %vm300, %v295, %v297
  %v308 = vsel %vm300, %v297, %v299
  %317 = vrot.lane.b32.xlu0 %v54, 90
  %v318 = vpop.permute.xlu0 %317
  %319 = vrot.lane.b32.xlu0 %v55, 90
  %v320 = vpop.permute.xlu0 %319
  %321 = vrot.lane.b32.xlu0 %v56, 90
  %v322 = vpop.permute.xlu0 %321
  %323 = vrot.lane.b32.xlu0 %v57, 90
  %v324 = vpop.permute.xlu0 %323
  %325 = vrot.lane.b32.xlu0 %v58, 90
  %v326 = vpop.permute.xlu0 %325
  %327 = vrot.lane.b32.xlu0 %v59, 90
  %v328 = vpop.permute.xlu0 %327
  %329 = vrot.lane.b32.xlu0 %v60, 90
  %v330 = vpop.permute.xlu0 %329
  %331 = vrot.lane.b32.xlu0 %v61, 90
  %v332 = vpop.permute.xlu0 %331
  %333 = vrot.lane.b32.xlu0 %v62, 90
  %v334 = vpop.permute.xlu0 %333
  %vm335 = vcmask 736256
  %v336 = vsel %vm335, %v318, %v320
  %v337 = vsel %vm335, %v320, %v322
  %v338 = vsel %vm335, %v322, %v324
  %v339 = vsel %vm335, %v324, %v326
  %v340 = vsel %vm335, %v326, %v328
  %v341 = vsel %vm335, %v328, %v330
  %v342 = vsel %vm335, %v330, %v332
  %v343 = vsel %vm335, %v332, %v334
  %v352 = vpack.c.bf16 %v91, %v46
  %v353 = vpack.c.bf16 %v92, %v47
  %v354 = vpack.c.bf16 %v93, %v48
  %v355 = vpack.c.bf16 %v94, %v49
  %v356 = vpack.c.bf16 %v95, %v50
  %v357 = vpack.c.bf16 %v96, %v51
  %v358 = vpack.c.bf16 %v97, %v52
  %v359 = vpack.c.bf16 %v98, %v53
  %v360 = vpack.c.bf16 %v161, %v126
  %v361 = vpack.c.bf16 %v162, %v127
  %v362 = vpack.c.bf16 %v163, %v128
  %v363 = vpack.c.bf16 %v164, %v129
  %v364 = vpack.c.bf16 %v165, %v130
  %v365 = vpack.c.bf16 %v166, %v131
  %v366 = vpack.c.bf16 %v167, %v132
  %v367 = vpack.c.bf16 %v168, %v133
  %v368 = vpack.c.bf16 %v231, %v196
  %v369 = vpack.c.bf16 %v232, %v197
  %v370 = vpack.c.bf16 %v233, %v198
  %v371 = vpack.c.bf16 %v234, %v199
  %v372 = vpack.c.bf16 %v235, %v200
  %v373 = vpack.c.bf16 %v236, %v201
  %v374 = vpack.c.bf16 %v237, %v202
  %v375 = vpack.c.bf16 %v238, %v203
  %v376 = vpack.c.bf16 %v301, %v266
  %v377 = vpack.c.bf16 %v302, %v267
  %v378 = vpack.c.bf16 %v303, %v268
  %v379 = vpack.c.bf16 %v304, %v269
  %v380 = vpack.c.bf16 %v305, %v270
  %v381 = vpack.c.bf16 %v306, %v271
  %v382 = vpack.c.bf16 %v307, %v272
  %v383 = vpack.c.bf16 %v308, %v273
  %v384 = vpack.c.bf16 %v336, %v336
  %v385 = vpack.c.bf16 %v337, %v337
  %v386 = vpack.c.bf16 %v338, %v338
  %v387 = vpack.c.bf16 %v339, %v339
  %v388 = vpack.c.bf16 %v340, %v340
  %v389 = vpack.c.bf16 %v341, %v341
  %v390 = vpack.c.bf16 %v342, %v342
  %v391 = vpack.c.bf16 %v343, %v343
  %v392 = vld [vmem:[%s2] sm:$0xf]
  %v393 = vld [vmem:[%s3] sm:$0xff]
  %395 = vset.pattern.permute.xlu0 0
  %396 = vperm.xlu0 %395, %v393
  %v397 = vpop.permute.xlu0 %396
  %vm399 = vcmask 588800
  %v401 = vsel %vm399, %v392, 0
  %vm403 = vcmask 1043456
  %v405 = vsel %vm403, %v384, 0
  %v408 = vsel %vm403, %v385, 0
  %v411 = vsel %vm403, %v386, 0
  %v414 = vsel %vm403, %v387, 0
  %v417 = vsel %vm403, %v388, 0
  %v420 = vsel %vm403, %v389, 0
  %v423 = vsel %vm403, %v390, 0
  %v426 = vsel %vm403, %v391, 0
  %428 = vmatpush.bf16.msra.mxu0 0
  %429 = vmatpush.bf16.msra.mxu0 0
  %430 = vmatpush.bf16.msra.mxu0 0
  %431 = vmatpush.bf16.msra.mxu0 %v405
  %432 = vmatpush.bf16.msra.mxu0 %v376
  %433 = vmatpush.bf16.msra.mxu0 %v368
  %434 = vmatpush.bf16.msra.mxu0 %v360
  %435 = vmatpush.bf16.msra.mxu0 %v352
  %436 = vmatmul.bf16.gmra.mxu0 %v401
  %v437 = vpop.f32.mrf.mxu0
  %v438 = vadd.f32 %v397, %v437
  %v439 = vpop.f32.mrf.mxu0
  %440 = vdwg.mxu0
  %441 = vmatpush.bf16.msra.mxu0 0
  %442 = vmatpush.bf16.msra.mxu0 0
  %443 = vmatpush.bf16.msra.mxu0 0
  %444 = vmatpush.bf16.msra.mxu0 %v408
  %445 = vmatpush.bf16.msra.mxu0 %v377
  %446 = vmatpush.bf16.msra.mxu0 %v369
  %447 = vmatpush.bf16.msra.mxu0 %v361
  %448 = vmatpush.bf16.msra.mxu0 %v353
  %449 = vmatmul.bf16.gmra.mxu0 %v401
  %v450 = vpop.f32.mrf.mxu0
  %v451 = vadd.f32 %v397, %v450
  %v452 = vpop.f32.mrf.mxu0
  %453 = vdwg.mxu0
  %454 = vmatpush.bf16.msra.mxu0 0
  %455 = vmatpush.bf16.msra.mxu0 0
  %456 = vmatpush.bf16.msra.mxu0 0
  %457 = vmatpush.bf16.msra.mxu0 %v411
  %458 = vmatpush.bf16.msra.mxu0 %v378
  %459 = vmatpush.bf16.msra.mxu0 %v370
  %460 = vmatpush.bf16.msra.mxu0 %v362
  %461 = vmatpush.bf16.msra.mxu0 %v354
  %462 = vmatmul.bf16.gmra.mxu0 %v401
  %v463 = vpop.f32.mrf.mxu0
  %v464 = vadd.f32 %v397, %v463
  %v465 = vpop.f32.mrf.mxu0
  %466 = vdwg.mxu0
  %467 = vmatpush.bf16.msra.mxu0 0
  %468 = vmatpush.bf16.msra.mxu0 0
  %469 = vmatpush.bf16.msra.mxu0 0
  %470 = vmatpush.bf16.msra.mxu0 %v414
  %471 = vmatpush.bf16.msra.mxu0 %v379
  %472 = vmatpush.bf16.msra.mxu0 %v371
  %473 = vmatpush.bf16.msra.mxu0 %v363
  %474 = vmatpush.bf16.msra.mxu0 %v355
  %475 = vmatmul.bf16.gmra.mxu0 %v401
  %v476 = vpop.f32.mrf.mxu0
  %v477 = vadd.f32 %v397, %v476
  %v478 = vpop.f32.mrf.mxu0
  %479 = vdwg.mxu0
  %480 = vmatpush.bf16.msra.mxu0 0
  %481 = vmatpush.bf16.msra.mxu0 0
  %482 = vmatpush.bf16.msra.mxu0 0
  %483 = vmatpush.bf16.msra.mxu0 %v417
  %484 = vmatpush.bf16.msra.mxu0 %v380
  %485 = vmatpush.bf16.msra.mxu0 %v372
  %486 = vmatpush.bf16.msra.mxu0 %v364
  %487 = vmatpush.bf16.msra.mxu0 %v356
  %488 = vmatmul.bf16.gmra.mxu0 %v401
  %v489 = vpop.f32.mrf.mxu0
  %v490 = vadd.f32 %v397, %v489
  %v491 = vpop.f32.mrf.mxu0
  %492 = vdwg.mxu0
  %493 = vmatpush.bf16.msra.mxu0 0
  %494 = vmatpush.bf16.msra.mxu0 0
  %495 = vmatpush.bf16.msra.mxu0 0
  %496 = vmatpush.bf16.msra.mxu0 %v420
  %497 = vmatpush.bf16.msra.mxu0 %v381
  %498 = vmatpush.bf16.msra.mxu0 %v373
  %499 = vmatpush.bf16.msra.mxu0 %v365
  %500 = vmatpush.bf16.msra.mxu0 %v357
  %501 = vmatmul.bf16.gmra.mxu0 %v401
  %v502 = vpop.f32.mrf.mxu0
  %v503 = vadd.f32 %v397, %v502
  %v504 = vpop.f32.mrf.mxu0
  %505 = vdwg.mxu0
  %506 = vmatpush.bf16.msra.mxu0 0
  %507 = vmatpush.bf16.msra.mxu0 0
  %508 = vmatpush.bf16.msra.mxu0 0
  %509 = vmatpush.bf16.msra.mxu0 %v423
  %510 = vmatpush.bf16.msra.mxu0 %v382
  %511 = vmatpush.bf16.msra.mxu0 %v374
  %512 = vmatpush.bf16.msra.mxu0 %v366
  %513 = vmatpush.bf16.msra.mxu0 %v358
  %514 = vmatmul.bf16.gmra.mxu0 %v401
  %v515 = vpop.f32.mrf.mxu0
  %v516 = vadd.f32 %v397, %v515
  %v517 = vpop.f32.mrf.mxu0
  %518 = vdwg.mxu0
  %519 = vmatpush.bf16.msra.mxu0 0
  %520 = vmatpush.bf16.msra.mxu0 0
  %521 = vmatpush.bf16.msra.mxu0 0
  %522 = vmatpush.bf16.msra.mxu0 %v426
  %523 = vmatpush.bf16.msra.mxu0 %v383
  %524 = vmatpush.bf16.msra.mxu0 %v375
  %525 = vmatpush.bf16.msra.mxu0 %v367
  %526 = vmatpush.bf16.msra.mxu0 %v359
  %527 = vmatmul.bf16.gmra.mxu0 %v401
  %v528 = vpop.f32.mrf.mxu0
  %v529 = vadd.f32 %v397, %v528
  %v530 = vpop.f32.mrf.mxu0
  %531 = vdwg.mxu0
  %v533 = vperm.slane %v36, 0
  %v534 = vperm.slane %v36, 1
  %v535 = vperm.slane %v36, 2
  %v536 = vperm.slane %v36, 3
  %v537 = vperm.slane %v36, 4
  %v538 = vperm.slane %v36, 5
  %v539 = vperm.slane %v36, 6
  %v540 = vperm.slane %v36, 7
  %v549 = vmul.f32 %v438, %v533
  %v550 = vmul.f32 %v451, %v534
  %v551 = vmul.f32 %v464, %v535
  %v552 = vmul.f32 %v477, %v536
  %v553 = vmul.f32 %v490, %v537
  %v554 = vmul.f32 %v503, %v538
  %v555 = vmul.f32 %v516, %v539
  %v556 = vmul.f32 %v529, %v540
  %565 = vrot.lane.b32.xlu0 %v549, 19
  %v566 = vpop.permute.xlu0 %565
  %567 = vrot.lane.b32.xlu0 %v550, 19
  %v568 = vpop.permute.xlu0 %567
  %569 = vrot.lane.b32.xlu0 %v551, 19
  %v570 = vpop.permute.xlu0 %569
  %571 = vrot.lane.b32.xlu0 %v552, 19
  %v572 = vpop.permute.xlu0 %571
  %573 = vrot.lane.b32.xlu0 %v553, 19
  %v574 = vpop.permute.xlu0 %573
  %575 = vrot.lane.b32.xlu0 %v554, 19
  %v576 = vpop.permute.xlu0 %575
  %577 = vrot.lane.b32.xlu0 %v555, 19
  %v578 = vpop.permute.xlu0 %577
  %579 = vrot.lane.b32.xlu0 %v556, 19
  %v580 = vpop.permute.xlu0 %579
  %vm581 = vcmask 154624
  %v582 = vsel %vm581, %v566, %v568
  %v583 = vsel %vm581, %v568, %v570
  %v584 = vsel %vm581, %v570, %v572
  %v585 = vsel %vm581, %v572, %v574
  %v586 = vsel %vm581, %v574, %v576
  %v587 = vsel %vm581, %v576, %v578
  %v588 = vsel %vm581, %v578, %v580
  %vm598 = vcmask 1047704
  %599 = vst.msk [vmem:[#allocation2] sm:$0xff] %vm598, %v566
  %600 = vst [vmem:[#allocation2 + $0x8] sm:$0xff] %v582
  %601 = vst [vmem:[#allocation2 + $0x10] sm:$0xff] %v583
  %602 = vst [vmem:[#allocation2 + $0x18] sm:$0xff] %v584
  %603 = vst [vmem:[#allocation2 + $0x20] sm:$0xff] %v585
  %604 = vst [vmem:[#allocation2 + $0x28] sm:$0xff] %v586
  %605 = vst [vmem:[#allocation2 + $0x30] sm:$0xff] %v587
  %606 = vst [vmem:[#allocation2 + $0x38] sm:$0xff] %v588
  %607 = vst.msk [vmem:[#allocation2 + $0x40] sm:$0xff] %vm581, %v580
  %v608 = vld [vmem:[#allocation2] sm:$0xff]
  %v609 = vld [vmem:[#allocation2 + $0x8] sm:$0xff]
  %v610 = vld [vmem:[#allocation2 + $0x10] sm:$0xff]
  %v611 = vld [vmem:[#allocation2 + $0x18] sm:$0xff]
  %v612 = vld [vmem:[#allocation2 + $0x20] sm:$0xff]
  %v613 = vld [vmem:[#allocation2 + $0x28] sm:$0xff]
  %v614 = vld [vmem:[#allocation2 + $0x30] sm:$0xff]
  %v615 = vld [vmem:[#allocation2 + $0x38] sm:$0xff]
  %v616 = vld [vmem:[#allocation2] sm:$0xff]
  %v617 = vld [vmem:[#allocation2 + $0x8] sm:$0xff]
  %v618 = vld [vmem:[#allocation2 + $0x10] sm:$0xff]
  %v619 = vld [vmem:[#allocation2 + $0x18] sm:$0xff]
  %v620 = vld [vmem:[#allocation2 + $0x20] sm:$0xff]
  %v621 = vld [vmem:[#allocation2 + $0x28] sm:$0xff]
  %v622 = vld [vmem:[#allocation2 + $0x30] sm:$0xff]
  %v623 = vld [vmem:[#allocation2 + $0x38] sm:$0xff]
  %v624 = vld [vmem:[#allocation2 + $0x40] sm:$0xff]
  %634 = vrot.lane.b32.xlu0 %v616, 127
  %v635 = vpop.permute.xlu0 %634
  %636 = vrot.lane.b32.xlu0 %v617, 127
  %v637 = vpop.permute.xlu0 %636
  %638 = vrot.lane.b32.xlu0 %v618, 127
  %v639 = vpop.permute.xlu0 %638
  %640 = vrot.lane.b32.xlu0 %v619, 127
  %v641 = vpop.permute.xlu0 %640
  %642 = vrot.lane.b32.xlu0 %v620, 127
  %v643 = vpop.permute.xlu0 %642
  %644 = vrot.lane.b32.xlu0 %v621, 127
  %v645 = vpop.permute.xlu0 %644
  %646 = vrot.lane.b32.xlu0 %v622, 127
  %v647 = vpop.permute.xlu0 %646
  %648 = vrot.lane.b32.xlu0 %v623, 127
  %v649 = vpop.permute.xlu0 %648
  %650 = vrot.lane.b32.xlu0 %v624, 127
  %v651 = vpop.permute.xlu0 %650
  %v652 = vsel %vm90, %v635, %v637
  %v653 = vsel %vm90, %v637, %v639
  %v654 = vsel %vm90, %v639, %v641
  %v655 = vsel %vm90, %v641, %v643
  %v656 = vsel %vm90, %v643, %v645
  %v657 = vsel %vm90, %v645, %v647
  %v658 = vsel %vm90, %v647, %v649
  %v659 = vsel %vm90, %v649, %v651
  %668 = vrot.lane.b32.xlu0 %v616, 126
  %v669 = vpop.permute.xlu0 %668
  %670 = vrot.lane.b32.xlu0 %v617, 126
  %v671 = vpop.permute.xlu0 %670
  %672 = vrot.lane.b32.xlu0 %v618, 126
  %v673 = vpop.permute.xlu0 %672
  %674 = vrot.lane.b32.xlu0 %v619, 126
  %v675 = vpop.permute.xlu0 %674
  %676 = vrot.lane.b32.xlu0 %v620, 126
  %v677 = vpop.permute.xlu0 %676
  %678 = vrot.lane.b32.xlu0 %v621, 126
  %v679 = vpop.permute.xlu0 %678
  %680 = vrot.lane.b32.xlu0 %v622, 126
  %v681 = vpop.permute.xlu0 %680
  %682 = vrot.lane.b32.xlu0 %v623, 126
  %v683 = vpop.permute.xlu0 %682
  %684 = vrot.lane.b32.xlu0 %v624, 126
  %v685 = vpop.permute.xlu0 %684
  %v686 = vsel %vm125, %v669, %v671
  %v687 = vsel %vm125, %v671, %v673
  %v688 = vsel %vm125, %v673, %v675
  %v689 = vsel %vm125, %v675, %v677
  %v690 = vsel %vm125, %v677, %v679
  %v691 = vsel %vm125, %v679, %v681
  %v692 = vsel %vm125, %v681, %v683
  %v693 = vsel %vm125, %v683, %v685
  %702 = vrot.lane.b32.xlu0 %v616, 110
  %v703 = vpop.permute.xlu0 %702
  %704 = vrot.lane.b32.xlu0 %v617, 110
  %v705 = vpop.permute.xlu0 %704
  %706 = vrot.lane.b32.xlu0 %v618, 110
  %v707 = vpop.permute.xlu0 %706
  %708 = vrot.lane.b32.xlu0 %v619, 110
  %v709 = vpop.permute.xlu0 %708
  %710 = vrot.lane.b32.xlu0 %v620, 110
  %v711 = vpop.permute.xlu0 %710
  %712 = vrot.lane.b32.xlu0 %v621, 110
  %v713 = vpop.permute.xlu0 %712
  %714 = vrot.lane.b32.xlu0 %v622, 110
  %v715 = vpop.permute.xlu0 %714
  %716 = vrot.lane.b32.xlu0 %v623, 110
  %v717 = vpop.permute.xlu0 %716
  %718 = vrot.lane.b32.xlu0 %v624, 110
  %v719 = vpop.permute.xlu0 %718
  %v720 = vsel %vm160, %v703, %v705
  %v721 = vsel %vm160, %v705, %v707
  %v722 = vsel %vm160, %v707, %v709
  %v723 = vsel %vm160, %v709, %v711
  %v724 = vsel %vm160, %v711, %v713
  %v725 = vsel %vm160, %v713, %v715
  %v726 = vsel %vm160, %v715, %v717
  %v727 = vsel %vm160, %v717, %v719
  %736 = vrot.lane.b32.xlu0 %v616, 109
  %v737 = vpop.permute.xlu0 %736
  %738 = vrot.lane.b32.xlu0 %v617, 109
  %v739 = vpop.permute.xlu0 %738
  %740 = vrot.lane.b32.xlu0 %v618, 109
  %v741 = vpop.permute.xlu0 %740
  %742 = vrot.lane.b32.xlu0 %v619, 109
  %v743 = vpop.permute.xlu0 %742
  %744 = vrot.lane.b32.xlu0 %v620, 109
  %v745 = vpop.permute.xlu0 %744
  %746 = vrot.lane.b32.xlu0 %v621, 109
  %v747 = vpop.permute.xlu0 %746
  %748 = vrot.lane.b32.xlu0 %v622, 109
  %v749 = vpop.permute.xlu0 %748
  %750 = vrot.lane.b32.xlu0 %v623, 109
  %v751 = vpop.permute.xlu0 %750
  %752 = vrot.lane.b32.xlu0 %v624, 109
  %v753 = vpop.permute.xlu0 %752
  %v754 = vsel %vm195, %v737, %v739
  %v755 = vsel %vm195, %v739, %v741
  %v756 = vsel %vm195, %v741, %v743
  %v757 = vsel %vm195, %v743, %v745
  %v758 = vsel %vm195, %v745, %v747
  %v759 = vsel %vm195, %v747, %v749
  %v760 = vsel %vm195, %v749, %v751
  %v761 = vsel %vm195, %v751, %v753
  %770 = vrot.lane.b32.xlu0 %v616, 108
  %v771 = vpop.permute.xlu0 %770
  %772 = vrot.lane.b32.xlu0 %v617, 108
  %v773 = vpop.permute.xlu0 %772
  %774 = vrot.lane.b32.xlu0 %v618, 108
  %v775 = vpop.permute.xlu0 %774
  %776 = vrot.lane.b32.xlu0 %v619, 108
  %v777 = vpop.permute.xlu0 %776
  %778 = vrot.lane.b32.xlu0 %v620, 108
  %v779 = vpop.permute.xlu0 %778
  %780 = vrot.lane.b32.xlu0 %v621, 108
  %v781 = vpop.permute.xlu0 %780
  %782 = vrot.lane.b32.xlu0 %v622, 108
  %v783 = vpop.permute.xlu0 %782
  %784 = vrot.lane.b32.xlu0 %v623, 108
  %v785 = vpop.permute.xlu0 %784
  %786 = vrot.lane.b32.xlu0 %v624, 108
  %v787 = vpop.permute.xlu0 %786
  %v788 = vsel %vm230, %v771, %v773
  %v789 = vsel %vm230, %v773, %v775
  %v790 = vsel %vm230, %v775, %v777
  %v791 = vsel %vm230, %v777, %v779
  %v792 = vsel %vm230, %v779, %v781
  %v793 = vsel %vm230, %v781, %v783
  %v794 = vsel %vm230, %v783, %v785
  %v795 = vsel %vm230, %v785, %v787
  %804 = vrot.lane.b32.xlu0 %v616, 92
  %v805 = vpop.permute.xlu0 %804
  %806 = vrot.lane.b32.xlu0 %v617, 92
  %v807 = vpop.permute.xlu0 %806
  %808 = vrot.lane.b32.xlu0 %v618, 92
  %v809 = vpop.permute.xlu0 %808
  %810 = vrot.lane.b32.xlu0 %v619, 92
  %v811 = vpop.permute.xlu0 %810
  %812 = vrot.lane.b32.xlu0 %v620, 92
  %v813 = vpop.permute.xlu0 %812
  %814 = vrot.lane.b32.xlu0 %v621, 92
  %v815 = vpop.permute.xlu0 %814
  %816 = vrot.lane.b32.xlu0 %v622, 92
  %v817 = vpop.permute.xlu0 %816
  %818 = vrot.lane.b32.xlu0 %v623, 92
  %v819 = vpop.permute.xlu0 %818
  %820 = vrot.lane.b32.xlu0 %v624, 92
  %v821 = vpop.permute.xlu0 %820
  %v822 = vsel %vm265, %v805, %v807
  %v823 = vsel %vm265, %v807, %v809
  %v824 = vsel %vm265, %v809, %v811
  %v825 = vsel %vm265, %v811, %v813
  %v826 = vsel %vm265, %v813, %v815
  %v827 = vsel %vm265, %v815, %v817
  %v828 = vsel %vm265, %v817, %v819
  %v829 = vsel %vm265, %v819, %v821
  %838 = vrot.lane.b32.xlu0 %v616, 91
  %v839 = vpop.permute.xlu0 %838
  %840 = vrot.lane.b32.xlu0 %v617, 91
  %v841 = vpop.permute.xlu0 %840
  %842 = vrot.lane.b32.xlu0 %v618, 91
  %v843 = vpop.permute.xlu0 %842
  %844 = vrot.lane.b32.xlu0 %v619, 91
  %v845 = vpop.permute.xlu0 %844
  %846 = vrot.lane.b32.xlu0 %v620, 91
  %v847 = vpop.permute.xlu0 %846
  %848 = vrot.lane.b32.xlu0 %v621, 91
  %v849 = vpop.permute.xlu0 %848
  %850 = vrot.lane.b32.xlu0 %v622, 91
  %v851 = vpop.permute.xlu0 %850
  %852 = vrot.lane.b32.xlu0 %v623, 91
  %v853 = vpop.permute.xlu0 %852
  %854 = vrot.lane.b32.xlu0 %v624, 91
  %v855 = vpop.permute.xlu0 %854
  %v856 = vsel %vm300, %v839, %v841
  %v857 = vsel %vm300, %v841, %v843
  %v858 = vsel %vm300, %v843, %v845
  %v859 = vsel %vm300, %v845, %v847
  %v860 = vsel %vm300, %v847, %v849
  %v861 = vsel %vm300, %v849, %v851
  %v862 = vsel %vm300, %v851, %v853
  %v863 = vsel %vm300, %v853, %v855
  %872 = vrot.lane.b32.xlu0 %v616, 90
  %v873 = vpop.permute.xlu0 %872
  %874 = vrot.lane.b32.xlu0 %v617, 90
  %v875 = vpop.permute.xlu0 %874
  %876 = vrot.lane.b32.xlu0 %v618, 90
  %v877 = vpop.permute.xlu0 %876
  %878 = vrot.lane.b32.xlu0 %v619, 90
  %v879 = vpop.permute.xlu0 %878
  %880 = vrot.lane.b32.xlu0 %v620, 90
  %v881 = vpop.permute.xlu0 %880
  %882 = vrot.lane.b32.xlu0 %v621, 90
  %v883 = vpop.permute.xlu0 %882
  %884 = vrot.lane.b32.xlu0 %v622, 90
  %v885 = vpop.permute.xlu0 %884
  %886 = vrot.lane.b32.xlu0 %v623, 90
  %v887 = vpop.permute.xlu0 %886
  %888 = vrot.lane.b32.xlu0 %v624, 90
  %v889 = vpop.permute.xlu0 %888
  %v890 = vsel %vm335, %v873, %v875
  %v891 = vsel %vm335, %v875, %v877
  %v892 = vsel %vm335, %v877, %v879
  %v893 = vsel %vm335, %v879, %v881
  %v894 = vsel %vm335, %v881, %v883
  %v895 = vsel %vm335, %v883, %v885
  %v896 = vsel %vm335, %v885, %v887
  %v897 = vsel %vm335, %v887, %v889
  %v906 = vpack.c.bf16 %v652, %v608
  %v907 = vpack.c.bf16 %v653, %v609
  %v908 = vpack.c.bf16 %v654, %v610
  %v909 = vpack.c.bf16 %v655, %v611
  %v910 = vpack.c.bf16 %v656, %v612
  %v911 = vpack.c.bf16 %v657, %v613
  %v912 = vpack.c.bf16 %v658, %v614
  %v913 = vpack.c.bf16 %v659, %v615
  %v914 = vpack.c.bf16 %v720, %v686
  %v915 = vpack.c.bf16 %v721, %v687
  %v916 = vpack.c.bf16 %v722, %v688
  %v917 = vpack.c.bf16 %v723, %v689
  %v918 = vpack.c.bf16 %v724, %v690
  %v919 = vpack.c.bf16 %v725, %v691
  %v920 = vpack.c.bf16 %v726, %v692
  %v921 = vpack.c.bf16 %v727, %v693
  %v922 = vpack.c.bf16 %v788, %v754
  %v923 = vpack.c.bf16 %v789, %v755
  %v924 = vpack.c.bf16 %v790, %v756
  %v925 = vpack.c.bf16 %v791, %v757
  %v926 = vpack.c.bf16 %v792, %v758
  %v927 = vpack.c.bf16 %v793, %v759
  %v928 = vpack.c.bf16 %v794, %v760
  %v929 = vpack.c.bf16 %v795, %v761
  %v930 = vpack.c.bf16 %v856, %v822
  %v931 = vpack.c.bf16 %v857, %v823
  %v932 = vpack.c.bf16 %v858, %v824
  %v933 = vpack.c.bf16 %v859, %v825
  %v934 = vpack.c.bf16 %v860, %v826
  %v935 = vpack.c.bf16 %v861, %v827
  %v936 = vpack.c.bf16 %v862, %v828
  %v937 = vpack.c.bf16 %v863, %v829
  %v938 = vpack.c.bf16 %v890, %v890
  %v939 = vpack.c.bf16 %v891, %v891
  %v940 = vpack.c.bf16 %v892, %v892
  %v941 = vpack.c.bf16 %v893, %v893
  %v942 = vpack.c.bf16 %v894, %v894
  %v943 = vpack.c.bf16 %v895, %v895
  %v944 = vpack.c.bf16 %v896, %v896
  %v945 = vpack.c.bf16 %v897, %v897
  %v946 = vld [vmem:[%s4] sm:$0xf]
  %v947 = vld [vmem:[%s5] sm:$0xff]
  %949 = vset.pattern.permute.xlu0 0
  %950 = vperm.xlu0 %949, %v947
  %v951 = vpop.permute.xlu0 %950
  %v954 = vsel %vm399, %v946, 0
  %v957 = vsel %vm403, %v938, 0
  %v960 = vsel %vm403, %v939, 0
  %v963 = vsel %vm403, %v940, 0
  %v966 = vsel %vm403, %v941, 0
  %v969 = vsel %vm403, %v942, 0
  %v972 = vsel %vm403, %v943, 0
  %v975 = vsel %vm403, %v944, 0
  %v978 = vsel %vm403, %v945, 0
  %980 = vmatpush.bf16.msra.mxu0 0
  %981 = vmatpush.bf16.msra.mxu0 0
  %982 = vmatpush.bf16.msra.mxu0 0
  %983 = vmatpush.bf16.msra.mxu0 %v957
  %984 = vmatpush.bf16.msra.mxu0 %v930
  %985 = vmatpush.bf16.msra.mxu0 %v922
  %986 = vmatpush.bf16.msra.mxu0 %v914
  %987 = vmatpush.bf16.msra.mxu0 %v906
  %988 = vmatmul.bf16.gmra.mxu0 %v954
  %v989 = vpop.f32.mrf.mxu0
  %v990 = vadd.f32 %v951, %v989
  %v991 = vpop.f32.mrf.mxu0
  %992 = vdwg.mxu0
  %993 = vmatpush.bf16.msra.mxu0 0
  %994 = vmatpush.bf16.msra.mxu0 0
  %995 = vmatpush.bf16.msra.mxu0 0
  %996 = vmatpush.bf16.msra.mxu0 %v960
  %997 = vmatpush.bf16.msra.mxu0 %v931
  %998 = vmatpush.bf16.msra.mxu0 %v923
  %999 = vmatpush.bf16.msra.mxu0 %v915
  %1000 = vmatpush.bf16.msra.mxu0 %v907
  %1001 = vmatmul.bf16.gmra.mxu0 %v954
  %v1002 = vpop.f32.mrf.mxu0
  %v1003 = vadd.f32 %v951, %v1002
  %v1004 = vpop.f32.mrf.mxu0
  %1005 = vdwg.mxu0
  %1006 = vmatpush.bf16.msra.mxu0 0
  %1007 = vmatpush.bf16.msra.mxu0 0
  %1008 = vmatpush.bf16.msra.mxu0 0
  %1009 = vmatpush.bf16.msra.mxu0 %v963
  %1010 = vmatpush.bf16.msra.mxu0 %v932
  %1011 = vmatpush.bf16.msra.mxu0 %v924
  %1012 = vmatpush.bf16.msra.mxu0 %v916
  %1013 = vmatpush.bf16.msra.mxu0 %v908
  %1014 = vmatmul.bf16.gmra.mxu0 %v954
  %v1015 = vpop.f32.mrf.mxu0
  %v1016 = vadd.f32 %v951, %v1015
  %v1017 = vpop.f32.mrf.mxu0
  %1018 = vdwg.mxu0
  %1019 = vmatpush.bf16.msra.mxu0 0
  %1020 = vmatpush.bf16.msra.mxu0 0
  %1021 = vmatpush.bf16.msra.mxu0 0
  %1022 = vmatpush.bf16.msra.mxu0 %v966
  %1023 = vmatpush.bf16.msra.mxu0 %v933
  %1024 = vmatpush.bf16.msra.mxu0 %v925
  %1025 = vmatpush.bf16.msra.mxu0 %v917
  %1026 = vmatpush.bf16.msra.mxu0 %v909
  %1027 = vmatmul.bf16.gmra.mxu0 %v954
  %v1028 = vpop.f32.mrf.mxu0
  %v1029 = vadd.f32 %v951, %v1028
  %v1030 = vpop.f32.mrf.mxu0
  %1031 = vdwg.mxu0
  %1032 = vmatpush.bf16.msra.mxu0 0
  %1033 = vmatpush.bf16.msra.mxu0 0
  %1034 = vmatpush.bf16.msra.mxu0 0
  %1035 = vmatpush.bf16.msra.mxu0 %v969
  %1036 = vmatpush.bf16.msra.mxu0 %v934
  %1037 = vmatpush.bf16.msra.mxu0 %v926
  %1038 = vmatpush.bf16.msra.mxu0 %v918
  %1039 = vmatpush.bf16.msra.mxu0 %v910
  %1040 = vmatmul.bf16.gmra.mxu0 %v954
  %v1041 = vpop.f32.mrf.mxu0
  %v1042 = vadd.f32 %v951, %v1041
  %v1043 = vpop.f32.mrf.mxu0
  %1044 = vdwg.mxu0
  %1045 = vmatpush.bf16.msra.mxu0 0
  %1046 = vmatpush.bf16.msra.mxu0 0
  %1047 = vmatpush.bf16.msra.mxu0 0
  %1048 = vmatpush.bf16.msra.mxu0 %v972
  %1049 = vmatpush.bf16.msra.mxu0 %v935
  %1050 = vmatpush.bf16.msra.mxu0 %v927
  %1051 = vmatpush.bf16.msra.mxu0 %v919
  %1052 = vmatpush.bf16.msra.mxu0 %v911
  %1053 = vmatmul.bf16.gmra.mxu0 %v954
  %v1054 = vpop.f32.mrf.mxu0
  %v1055 = vadd.f32 %v951, %v1054
  %v1056 = vpop.f32.mrf.mxu0
  %1057 = vdwg.mxu0
  %1058 = vmatpush.bf16.msra.mxu0 0
  %1059 = vmatpush.bf16.msra.mxu0 0
  %1060 = vmatpush.bf16.msra.mxu0 0
  %1061 = vmatpush.bf16.msra.mxu0 %v975
  %1062 = vmatpush.bf16.msra.mxu0 %v936
  %1063 = vmatpush.bf16.msra.mxu0 %v928
  %1064 = vmatpush.bf16.msra.mxu0 %v920
  %1065 = vmatpush.bf16.msra.mxu0 %v912
  %1066 = vmatmul.bf16.gmra.mxu0 %v954
  %v1067 = vpop.f32.mrf.mxu0
  %v1068 = vadd.f32 %v951, %v1067
  %v1069 = vpop.f32.mrf.mxu0
  %1070 = vdwg.mxu0
  %1071 = vmatpush.bf16.msra.mxu0 0
  %1072 = vmatpush.bf16.msra.mxu0 0
  %1073 = vmatpush.bf16.msra.mxu0 0
  %1074 = vmatpush.bf16.msra.mxu0 %v978
  %1075 = vmatpush.bf16.msra.mxu0 %v937
  %1076 = vmatpush.bf16.msra.mxu0 %v929
  %1077 = vmatpush.bf16.msra.mxu0 %v921
  %1078 = vmatpush.bf16.msra.mxu0 %v913
  %1079 = vmatmul.bf16.gmra.mxu0 %v954
  %v1080 = vpop.f32.mrf.mxu0
  %v1081 = vadd.f32 %v951, %v1080
  %v1082 = vpop.f32.mrf.mxu0
  %1083 = vdwg.mxu0
  %v1084 = vmul.f32 %v990, %v533
  %v1085 = vmul.f32 %v1003, %v534
  %v1086 = vmul.f32 %v1016, %v535
  %v1087 = vmul.f32 %v1029, %v536
  %v1088 = vmul.f32 %v1042, %v537
  %v1089 = vmul.f32 %v1055, %v538
  %v1090 = vmul.f32 %v1068, %v539
  %v1091 = vmul.f32 %v1081, %v540
  %v1092 = vmax.f32 %v1084, 0.0
  %v1093 = vmax.f32 %v1085, 0.0
  %v1094 = vmax.f32 %v1086, 0.0
  %v1095 = vmax.f32 %v1087, 0.0
  %v1096 = vmax.f32 %v1088, 0.0
  %v1097 = vmax.f32 %v1089, 0.0
  %v1098 = vmax.f32 %v1090, 0.0
  %v1099 = vmax.f32 %v1091, 0.0
  %1108 = vrot.lane.b32.xlu0 %v1092, 19
  %v1109 = vpop.permute.xlu0 %1108
  %1110 = vrot.lane.b32.xlu0 %v1093, 19
  %v1111 = vpop.permute.xlu0 %1110
  %1112 = vrot.lane.b32.xlu0 %v1094, 19
  %v1113 = vpop.permute.xlu0 %1112
  %1114 = vrot.lane.b32.xlu0 %v1095, 19
  %v1115 = vpop.permute.xlu0 %1114
  %1116 = vrot.lane.b32.xlu0 %v1096, 19
  %v1117 = vpop.permute.xlu0 %1116
  %1118 = vrot.lane.b32.xlu0 %v1097, 19
  %v1119 = vpop.permute.xlu0 %1118
  %1120 = vrot.lane.b32.xlu0 %v1098, 19
  %v1121 = vpop.permute.xlu0 %1120
  %1122 = vrot.lane.b32.xlu0 %v1099, 19
  %v1123 = vpop.permute.xlu0 %1122
  %v1124 = vsel %vm581, %v1109, %v1111
  %v1125 = vsel %vm581, %v1111, %v1113
  %v1126 = vsel %vm581, %v1113, %v1115
  %v1127 = vsel %vm581, %v1115, %v1117
  %v1128 = vsel %vm581, %v1117, %v1119
  %v1129 = vsel %vm581, %v1119, %v1121
  %v1130 = vsel %vm581, %v1121, %v1123
  %1140 = vst.msk [vmem:[#allocation2] sm:$0xff] %vm598, %v1109
  %1141 = vst [vmem:[#allocation2 + $0x8] sm:$0xff] %v1124
  %1142 = vst [vmem:[#allocation2 + $0x10] sm:$0xff] %v1125
  %1143 = vst [vmem:[#allocation2 + $0x18] sm:$0xff] %v1126
  %1144 = vst [vmem:[#allocation2 + $0x20] sm:$0xff] %v1127
  %1145 = vst [vmem:[#allocation2 + $0x28] sm:$0xff] %v1128
  %1146 = vst [vmem:[#allocation2 + $0x30] sm:$0xff] %v1129
  %1147 = vst [vmem:[#allocation2 + $0x38] sm:$0xff] %v1130
  %1148 = vst.msk [vmem:[#allocation2 + $0x40] sm:$0xff] %vm581, %v1123
  %v1149 = vld [vmem:[#allocation2] sm:$0xff]
  %v1150 = vld [vmem:[#allocation2 + $0x8] sm:$0xff]
  %v1151 = vld [vmem:[#allocation2 + $0x10] sm:$0xff]
  %v1152 = vld [vmem:[#allocation2 + $0x18] sm:$0xff]
  %v1153 = vld [vmem:[#allocation2 + $0x20] sm:$0xff]
  %v1154 = vld [vmem:[#allocation2 + $0x28] sm:$0xff]
  %v1155 = vld [vmem:[#allocation2 + $0x30] sm:$0xff]
  %v1156 = vld [vmem:[#allocation2 + $0x38] sm:$0xff]
  %v1157 = vld [vmem:[#allocation2] sm:$0xff]
  %v1158 = vld [vmem:[#allocation2 + $0x8] sm:$0xff]
  %v1159 = vld [vmem:[#allocation2 + $0x10] sm:$0xff]
  %v1160 = vld [vmem:[#allocation2 + $0x18] sm:$0xff]
  %v1161 = vld [vmem:[#allocation2 + $0x20] sm:$0xff]
  %v1162 = vld [vmem:[#allocation2 + $0x28] sm:$0xff]
  %v1163 = vld [vmem:[#allocation2 + $0x30] sm:$0xff]
  %v1164 = vld [vmem:[#allocation2 + $0x38] sm:$0xff]
  %v1165 = vld [vmem:[#allocation2 + $0x40] sm:$0xff]
  %1175 = vrot.lane.b32.xlu0 %v1157, 127
  %v1176 = vpop.permute.xlu0 %1175
  %1177 = vrot.lane.b32.xlu0 %v1158, 127
  %v1178 = vpop.permute.xlu0 %1177
  %1179 = vrot.lane.b32.xlu0 %v1159, 127
  %v1180 = vpop.permute.xlu0 %1179
  %1181 = vrot.lane.b32.xlu0 %v1160, 127
  %v1182 = vpop.permute.xlu0 %1181
  %1183 = vrot.lane.b32.xlu0 %v1161, 127
  %v1184 = vpop.permute.xlu0 %1183
  %1185 = vrot.lane.b32.xlu0 %v1162, 127
  %v1186 = vpop.permute.xlu0 %1185
  %1187 = vrot.lane.b32.xlu0 %v1163, 127
  %v1188 = vpop.permute.xlu0 %1187
  %1189 = vrot.lane.b32.xlu0 %v1164, 127
  %v1190 = vpop.permute.xlu0 %1189
  %1191 = vrot.lane.b32.xlu0 %v1165, 127
  %v1192 = vpop.permute.xlu0 %1191
  %v1193 = vsel %vm90, %v1176, %v1178
  %v1194 = vsel %vm90, %v1178, %v1180
  %v1195 = vsel %vm90, %v1180, %v1182
  %v1196 = vsel %vm90, %v1182, %v1184
  %v1197 = vsel %vm90, %v1184, %v1186
  %v1198 = vsel %vm90, %v1186, %v1188
  %v1199 = vsel %vm90, %v1188, %v1190
  %v1200 = vsel %vm90, %v1190, %v1192
  %1209 = vrot.lane.b32.xlu0 %v1157, 126
  %v1210 = vpop.permute.xlu0 %1209
  %1211 = vrot.lane.b32.xlu0 %v1158, 126
  %v1212 = vpop.permute.xlu0 %1211
  %1213 = vrot.lane.b32.xlu0 %v1159, 126
  %v1214 = vpop.permute.xlu0 %1213
  %1215 = vrot.lane.b32.xlu0 %v1160, 126
  %v1216 = vpop.permute.xlu0 %1215
  %1217 = vrot.lane.b32.xlu0 %v1161, 126
  %v1218 = vpop.permute.xlu0 %1217
  %1219 = vrot.lane.b32.xlu0 %v1162, 126
  %v1220 = vpop.permute.xlu0 %1219
  %1221 = vrot.lane.b32.xlu0 %v1163, 126
  %v1222 = vpop.permute.xlu0 %1221
  %1223 = vrot.lane.b32.xlu0 %v1164, 126
  %v1224 = vpop.permute.xlu0 %1223
  %1225 = vrot.lane.b32.xlu0 %v1165, 126
  %v1226 = vpop.permute.xlu0 %1225
  %v1227 = vsel %vm125, %v1210, %v1212
  %v1228 = vsel %vm125, %v1212, %v1214
  %v1229 = vsel %vm125, %v1214, %v1216
  %v1230 = vsel %vm125, %v1216, %v1218
  %v1231 = vsel %vm125, %v1218, %v1220
  %v1232 = vsel %vm125, %v1220, %v1222
  %v1233 = vsel %vm125, %v1222, %v1224
  %v1234 = vsel %vm125, %v1224, %v1226
  %1243 = vrot.lane.b32.xlu0 %v1157, 110
  %v1244 = vpop.permute.xlu0 %1243
  %1245 = vrot.lane.b32.xlu0 %v1158, 110
  %v1246 = vpop.permute.xlu0 %1245
  %1247 = vrot.lane.b32.xlu0 %v1159, 110
  %v1248 = vpop.permute.xlu0 %1247
  %1249 = vrot.lane.b32.xlu0 %v1160, 110
  %v1250 = vpop.permute.xlu0 %1249
  %1251 = vrot.lane.b32.xlu0 %v1161, 110
  %v1252 = vpop.permute.xlu0 %1251
  %1253 = vrot.lane.b32.xlu0 %v1162, 110
  %v1254 = vpop.permute.xlu0 %1253
  %1255 = vrot.lane.b32.xlu0 %v1163, 110
  %v1256 = vpop.permute.xlu0 %1255
  %1257 = vrot.lane.b32.xlu0 %v1164, 110
  %v1258 = vpop.permute.xlu0 %1257
  %1259 = vrot.lane.b32.xlu0 %v1165, 110
  %v1260 = vpop.permute.xlu0 %1259
  %v1261 = vsel %vm160, %v1244, %v1246
  %v1262 = vsel %vm160, %v1246, %v1248
  %v1263 = vsel %vm160, %v1248, %v1250
  %v1264 = vsel %vm160, %v1250, %v1252
  %v1265 = vsel %vm160, %v1252, %v1254
  %v1266 = vsel %vm160, %v1254, %v1256
  %v1267 = vsel %vm160, %v1256, %v1258
  %v1268 = vsel %vm160, %v1258, %v1260
  %1277 = vrot.lane.b32.xlu0 %v1157, 109
  %v1278 = vpop.permute.xlu0 %1277
  %1279 = vrot.lane.b32.xlu0 %v1158, 109
  %v1280 = vpop.permute.xlu0 %1279
  %1281 = vrot.lane.b32.xlu0 %v1159, 109
  %v1282 = vpop.permute.xlu0 %1281
  %1283 = vrot.lane.b32.xlu0 %v1160, 109
  %v1284 = vpop.permute.xlu0 %1283
  %1285 = vrot.lane.b32.xlu0 %v1161, 109
  %v1286 = vpop.permute.xlu0 %1285
  %1287 = vrot.lane.b32.xlu0 %v1162, 109
  %v1288 = vpop.permute.xlu0 %1287
  %1289 = vrot.lane.b32.xlu0 %v1163, 109
  %v1290 = vpop.permute.xlu0 %1289
  %1291 = vrot.lane.b32.xlu0 %v1164, 109
  %v1292 = vpop.permute.xlu0 %1291
  %1293 = vrot.lane.b32.xlu0 %v1165, 109
  %v1294 = vpop.permute.xlu0 %1293
  %v1295 = vsel %vm195, %v1278, %v1280
  %v1296 = vsel %vm195, %v1280, %v1282
  %v1297 = vsel %vm195, %v1282, %v1284
  %v1298 = vsel %vm195, %v1284, %v1286
  %v1299 = vsel %vm195, %v1286, %v1288
  %v1300 = vsel %vm195, %v1288, %v1290
  %v1301 = vsel %vm195, %v1290, %v1292
  %v1302 = vsel %vm195, %v1292, %v1294
  %1311 = vrot.lane.b32.xlu0 %v1157, 108
  %v1312 = vpop.permute.xlu0 %1311
  %1313 = vrot.lane.b32.xlu0 %v1158, 108
  %v1314 = vpop.permute.xlu0 %1313
  %1315 = vrot.lane.b32.xlu0 %v1159, 108
  %v1316 = vpop.permute.xlu0 %1315
  %1317 = vrot.lane.b32.xlu0 %v1160, 108
  %v1318 = vpop.permute.xlu0 %1317
  %1319 = vrot.lane.b32.xlu0 %v1161, 108
  %v1320 = vpop.permute.xlu0 %1319
  %1321 = vrot.lane.b32.xlu0 %v1162, 108
  %v1322 = vpop.permute.xlu0 %1321
  %1323 = vrot.lane.b32.xlu0 %v1163, 108
  %v1324 = vpop.permute.xlu0 %1323
  %1325 = vrot.lane.b32.xlu0 %v1164, 108
  %v1326 = vpop.permute.xlu0 %1325
  %1327 = vrot.lane.b32.xlu0 %v1165, 108
  %v1328 = vpop.permute.xlu0 %1327
  %v1329 = vsel %vm230, %v1312, %v1314
  %v1330 = vsel %vm230, %v1314, %v1316
  %v1331 = vsel %vm230, %v1316, %v1318
  %v1332 = vsel %vm230, %v1318, %v1320
  %v1333 = vsel %vm230, %v1320, %v1322
  %v1334 = vsel %vm230, %v1322, %v1324
  %v1335 = vsel %vm230, %v1324, %v1326
  %v1336 = vsel %vm230, %v1326, %v1328
  %1345 = vrot.lane.b32.xlu0 %v1157, 92
  %v1346 = vpop.permute.xlu0 %1345
  %1347 = vrot.lane.b32.xlu0 %v1158, 92
  %v1348 = vpop.permute.xlu0 %1347
  %1349 = vrot.lane.b32.xlu0 %v1159, 92
  %v1350 = vpop.permute.xlu0 %1349
  %1351 = vrot.lane.b32.xlu0 %v1160, 92
  %v1352 = vpop.permute.xlu0 %1351
  %1353 = vrot.lane.b32.xlu0 %v1161, 92
  %v1354 = vpop.permute.xlu0 %1353
  %1355 = vrot.lane.b32.xlu0 %v1162, 92
  %v1356 = vpop.permute.xlu0 %1355
  %1357 = vrot.lane.b32.xlu0 %v1163, 92
  %v1358 = vpop.permute.xlu0 %1357
  %1359 = vrot.lane.b32.xlu0 %v1164, 92
  %v1360 = vpop.permute.xlu0 %1359
  %1361 = vrot.lane.b32.xlu0 %v1165, 92
  %v1362 = vpop.permute.xlu0 %1361
  %v1363 = vsel %vm265, %v1346, %v1348
  %v1364 = vsel %vm265, %v1348, %v1350
  %v1365 = vsel %vm265, %v1350, %v1352
  %v1366 = vsel %vm265, %v1352, %v1354
  %v1367 = vsel %vm265, %v1354, %v1356
  %v1368 = vsel %vm265, %v1356, %v1358
  %v1369 = vsel %vm265, %v1358, %v1360
  %v1370 = vsel %vm265, %v1360, %v1362
  %1379 = vrot.lane.b32.xlu0 %v1157, 91
  %v1380 = vpop.permute.xlu0 %1379
  %1381 = vrot.lane.b32.xlu0 %v1158, 91
  %v1382 = vpop.permute.xlu0 %1381
  %1383 = vrot.lane.b32.xlu0 %v1159, 91
  %v1384 = vpop.permute.xlu0 %1383
  %1385 = vrot.lane.b32.xlu0 %v1160, 91
  %v1386 = vpop.permute.xlu0 %1385
  %1387 = vrot.lane.b32.xlu0 %v1161, 91
  %v1388 = vpop.permute.xlu0 %1387
  %1389 = vrot.lane.b32.xlu0 %v1162, 91
  %v1390 = vpop.permute.xlu0 %1389
  %1391 = vrot.lane.b32.xlu0 %v1163, 91
  %v1392 = vpop.permute.xlu0 %1391
  %1393 = vrot.lane.b32.xlu0 %v1164, 91
  %v1394 = vpop.permute.xlu0 %1393
  %1395 = vrot.lane.b32.xlu0 %v1165, 91
  %v1396 = vpop.permute.xlu0 %1395
  %v1397 = vsel %vm300, %v1380, %v1382
  %v1398 = vsel %vm300, %v1382, %v1384
  %v1399 = vsel %vm300, %v1384, %v1386
  %v1400 = vsel %vm300, %v1386, %v1388
  %v1401 = vsel %vm300, %v1388, %v1390
  %v1402 = vsel %vm300, %v1390, %v1392
  %v1403 = vsel %vm300, %v1392, %v1394
  %v1404 = vsel %vm300, %v1394, %v1396
  %1413 = vrot.lane.b32.xlu0 %v1157, 90
  %v1414 = vpop.permute.xlu0 %1413
  %1415 = vrot.lane.b32.xlu0 %v1158, 90
  %v1416 = vpop.permute.xlu0 %1415
  %1417 = vrot.lane.b32.xlu0 %v1159, 90
  %v1418 = vpop.permute.xlu0 %1417
  %1419 = vrot.lane.b32.xlu0 %v1160, 90
  %v1420 = vpop.permute.xlu0 %1419
  %1421 = vrot.lane.b32.xlu0 %v1161, 90
  %v1422 = vpop.permute.xlu0 %1421
  %1423 = vrot.lane.b32.xlu0 %v1162, 90
  %v1424 = vpop.permute.xlu0 %1423
  %1425 = vrot.lane.b32.xlu0 %v1163, 90
  %v1426 = vpop.permute.xlu0 %1425
  %1427 = vrot.lane.b32.xlu0 %v1164, 90
  %v1428 = vpop.permute.xlu0 %1427
  %1429 = vrot.lane.b32.xlu0 %v1165, 90
  %v1430 = vpop.permute.xlu0 %1429
  %v1431 = vsel %vm335, %v1414, %v1416
  %v1432 = vsel %vm335, %v1416, %v1418
  %v1433 = vsel %vm335, %v1418, %v1420
  %v1434 = vsel %vm335, %v1420, %v1422
  %v1435 = vsel %vm335, %v1422, %v1424
  %v1436 = vsel %vm335, %v1424, %v1426
  %v1437 = vsel %vm335, %v1426, %v1428
  %v1438 = vsel %vm335, %v1428, %v1430
  %v1447 = vpack.c.bf16 %v1193, %v1149
  %v1448 = vpack.c.bf16 %v1194, %v1150
  %v1449 = vpack.c.bf16 %v1195, %v1151
  %v1450 = vpack.c.bf16 %v1196, %v1152
  %v1451 = vpack.c.bf16 %v1197, %v1153
  %v1452 = vpack.c.bf16 %v1198, %v1154
  %v1453 = vpack.c.bf16 %v1199, %v1155
  %v1454 = vpack.c.bf16 %v1200, %v1156
  %v1455 = vpack.c.bf16 %v1261, %v1227
  %v1456 = vpack.c.bf16 %v1262, %v1228
  %v1457 = vpack.c.bf16 %v1263, %v1229
  %v1458 = vpack.c.bf16 %v1264, %v1230
  %v1459 = vpack.c.bf16 %v1265, %v1231
  %v1460 = vpack.c.bf16 %v1266, %v1232
  %v1461 = vpack.c.bf16 %v1267, %v1233
  %v1462 = vpack.c.bf16 %v1268, %v1234
  %v1463 = vpack.c.bf16 %v1329, %v1295
  %v1464 = vpack.c.bf16 %v1330, %v1296
  %v1465 = vpack.c.bf16 %v1331, %v1297
  %v1466 = vpack.c.bf16 %v1332, %v1298
  %v1467 = vpack.c.bf16 %v1333, %v1299
  %v1468 = vpack.c.bf16 %v1334, %v1300
  %v1469 = vpack.c.bf16 %v1335, %v1301
  %v1470 = vpack.c.bf16 %v1336, %v1302
  %v1471 = vpack.c.bf16 %v1397, %v1363
  %v1472 = vpack.c.bf16 %v1398, %v1364
  %v1473 = vpack.c.bf16 %v1399, %v1365
  %v1474 = vpack.c.bf16 %v1400, %v1366
  %v1475 = vpack.c.bf16 %v1401, %v1367
  %v1476 = vpack.c.bf16 %v1402, %v1368
  %v1477 = vpack.c.bf16 %v1403, %v1369
  %v1478 = vpack.c.bf16 %v1404, %v1370
  %v1479 = vpack.c.bf16 %v1431, %v1431
  %v1480 = vpack.c.bf16 %v1432, %v1432
  %v1481 = vpack.c.bf16 %v1433, %v1433
  %v1482 = vpack.c.bf16 %v1434, %v1434
  %v1483 = vpack.c.bf16 %v1435, %v1435
  %v1484 = vpack.c.bf16 %v1436, %v1436
  %v1485 = vpack.c.bf16 %v1437, %v1437
  %v1486 = vpack.c.bf16 %v1438, %v1438
  %v1487 = vld [vmem:[%s6] sm:$0xf]
  %v1488 = vld [vmem:[%s7] sm:$0xff]
  %1490 = vset.pattern.permute.xlu0 0
  %1491 = vperm.xlu0 %1490, %v1488
  %v1492 = vpop.permute.xlu0 %1491
  %v1495 = vsel %vm399, %v1487, 0
  %v1498 = vsel %vm403, %v1479, 0
  %v1501 = vsel %vm403, %v1480, 0
  %v1504 = vsel %vm403, %v1481, 0
  %v1507 = vsel %vm403, %v1482, 0
  %v1510 = vsel %vm403, %v1483, 0
  %v1513 = vsel %vm403, %v1484, 0
  %v1516 = vsel %vm403, %v1485, 0
  %v1519 = vsel %vm403, %v1486, 0
  %1521 = vmatpush.bf16.msra.mxu0 0
  %1522 = vmatpush.bf16.msra.mxu0 0
  %1523 = vmatpush.bf16.msra.mxu0 0
  %1524 = vmatpush.bf16.msra.mxu0 %v1498
  %1525 = vmatpush.bf16.msra.mxu0 %v1471
  %1526 = vmatpush.bf16.msra.mxu0 %v1463
  %1527 = vmatpush.bf16.msra.mxu0 %v1455
  %1528 = vmatpush.bf16.msra.mxu0 %v1447
  %1529 = vmatmul.bf16.gmra.mxu0 %v1495
  %v1530 = vpop.f32.mrf.mxu0
  %v1531 = vadd.f32 %v1492, %v1530
  %v1532 = vpop.f32.mrf.mxu0
  %1533 = vdwg.mxu0
  %1534 = vmatpush.bf16.msra.mxu0 0
  %1535 = vmatpush.bf16.msra.mxu0 0
  %1536 = vmatpush.bf16.msra.mxu0 0
  %1537 = vmatpush.bf16.msra.mxu0 %v1501
  %1538 = vmatpush.bf16.msra.mxu0 %v1472
  %1539 = vmatpush.bf16.msra.mxu0 %v1464
  %1540 = vmatpush.bf16.msra.mxu0 %v1456
  %1541 = vmatpush.bf16.msra.mxu0 %v1448
  %1542 = vmatmul.bf16.gmra.mxu0 %v1495
  %v1543 = vpop.f32.mrf.mxu0
  %v1544 = vadd.f32 %v1492, %v1543
  %v1545 = vpop.f32.mrf.mxu0
  %1546 = vdwg.mxu0
  %1547 = vmatpush.bf16.msra.mxu0 0
  %1548 = vmatpush.bf16.msra.mxu0 0
  %1549 = vmatpush.bf16.msra.mxu0 0
  %1550 = vmatpush.bf16.msra.mxu0 %v1504
  %1551 = vmatpush.bf16.msra.mxu0 %v1473
  %1552 = vmatpush.bf16.msra.mxu0 %v1465
  %1553 = vmatpush.bf16.msra.mxu0 %v1457
  %1554 = vmatpush.bf16.msra.mxu0 %v1449
  %1555 = vmatmul.bf16.gmra.mxu0 %v1495
  %v1556 = vpop.f32.mrf.mxu0
  %v1557 = vadd.f32 %v1492, %v1556
  %v1558 = vpop.f32.mrf.mxu0
  %1559 = vdwg.mxu0
  %1560 = vmatpush.bf16.msra.mxu0 0
  %1561 = vmatpush.bf16.msra.mxu0 0
  %1562 = vmatpush.bf16.msra.mxu0 0
  %1563 = vmatpush.bf16.msra.mxu0 %v1507
  %1564 = vmatpush.bf16.msra.mxu0 %v1474
  %1565 = vmatpush.bf16.msra.mxu0 %v1466
  %1566 = vmatpush.bf16.msra.mxu0 %v1458
  %1567 = vmatpush.bf16.msra.mxu0 %v1450
  %1568 = vmatmul.bf16.gmra.mxu0 %v1495
  %v1569 = vpop.f32.mrf.mxu0
  %v1570 = vadd.f32 %v1492, %v1569
  %v1571 = vpop.f32.mrf.mxu0
  %1572 = vdwg.mxu0
  %1573 = vmatpush.bf16.msra.mxu0 0
  %1574 = vmatpush.bf16.msra.mxu0 0
  %1575 = vmatpush.bf16.msra.mxu0 0
  %1576 = vmatpush.bf16.msra.mxu0 %v1510
  %1577 = vmatpush.bf16.msra.mxu0 %v1475
  %1578 = vmatpush.bf16.msra.mxu0 %v1467
  %1579 = vmatpush.bf16.msra.mxu0 %v1459
  %1580 = vmatpush.bf16.msra.mxu0 %v1451
  %1581 = vmatmul.bf16.gmra.mxu0 %v1495
  %v1582 = vpop.f32.mrf.mxu0
  %v1583 = vadd.f32 %v1492, %v1582
  %v1584 = vpop.f32.mrf.mxu0
  %1585 = vdwg.mxu0
  %1586 = vmatpush.bf16.msra.mxu0 0
  %1587 = vmatpush.bf16.msra.mxu0 0
  %1588 = vmatpush.bf16.msra.mxu0 0
  %1589 = vmatpush.bf16.msra.mxu0 %v1513
  %1590 = vmatpush.bf16.msra.mxu0 %v1476
  %1591 = vmatpush.bf16.msra.mxu0 %v1468
  %1592 = vmatpush.bf16.msra.mxu0 %v1460
  %1593 = vmatpush.bf16.msra.mxu0 %v1452
  %1594 = vmatmul.bf16.gmra.mxu0 %v1495
  %v1595 = vpop.f32.mrf.mxu0
  %v1596 = vadd.f32 %v1492, %v1595
  %v1597 = vpop.f32.mrf.mxu0
  %1598 = vdwg.mxu0
  %1599 = vmatpush.bf16.msra.mxu0 0
  %1600 = vmatpush.bf16.msra.mxu0 0
  %1601 = vmatpush.bf16.msra.mxu0 0
  %1602 = vmatpush.bf16.msra.mxu0 %v1516
  %1603 = vmatpush.bf16.msra.mxu0 %v1477
  %1604 = vmatpush.bf16.msra.mxu0 %v1469
  %1605 = vmatpush.bf16.msra.mxu0 %v1461
  %1606 = vmatpush.bf16.msra.mxu0 %v1453
  %1607 = vmatmul.bf16.gmra.mxu0 %v1495
  %v1608 = vpop.f32.mrf.mxu0
  %v1609 = vadd.f32 %v1492, %v1608
  %v1610 = vpop.f32.mrf.mxu0
  %1611 = vdwg.mxu0
  %1612 = vmatpush.bf16.msra.mxu0 0
  %1613 = vmatpush.bf16.msra.mxu0 0
  %1614 = vmatpush.bf16.msra.mxu0 0
  %1615 = vmatpush.bf16.msra.mxu0 %v1519
  %1616 = vmatpush.bf16.msra.mxu0 %v1478
  %1617 = vmatpush.bf16.msra.mxu0 %v1470
  %1618 = vmatpush.bf16.msra.mxu0 %v1462
  %1619 = vmatpush.bf16.msra.mxu0 %v1454
  %1620 = vmatmul.bf16.gmra.mxu0 %v1495
  %v1621 = vpop.f32.mrf.mxu0
  %v1622 = vadd.f32 %v1492, %v1621
  %v1623 = vpop.f32.mrf.mxu0
  %1624 = vdwg.mxu0
  %v1625 = vmul.f32 %v1531, %v533
  %v1626 = vmul.f32 %v1544, %v534
  %v1627 = vmul.f32 %v1557, %v535
  %v1628 = vmul.f32 %v1570, %v536
  %v1629 = vmul.f32 %v1583, %v537
  %v1630 = vmul.f32 %v1596, %v538
  %v1631 = vmul.f32 %v1609, %v539
  %v1632 = vmul.f32 %v1622, %v540
  %v1633 = vadd.f32 %v549, %v1625
  %v1634 = vadd.f32 %v550, %v1626
  %v1635 = vadd.f32 %v551, %v1627
  %v1636 = vadd.f32 %v552, %v1628
  %v1637 = vadd.f32 %v553, %v1629
  %v1638 = vadd.f32 %v554, %v1630
  %v1639 = vadd.f32 %v555, %v1631
  %v1640 = vadd.f32 %v556, %v1632
  %1649 = vrot.lane.b32.xlu0 %v1633, 19
  %v1650 = vpop.permute.xlu0 %1649
  %1651 = vrot.lane.b32.xlu0 %v1634, 19
  %v1652 = vpop.permute.xlu0 %1651
  %1653 = vrot.lane.b32.xlu0 %v1635, 19
  %v1654 = vpop.permute.xlu0 %1653
  %1655 = vrot.lane.b32.xlu0 %v1636, 19
  %v1656 = vpop.permute.xlu0 %1655
  %1657 = vrot.lane.b32.xlu0 %v1637, 19
  %v1658 = vpop.permute.xlu0 %1657
  %1659 = vrot.lane.b32.xlu0 %v1638, 19
  %v1660 = vpop.permute.xlu0 %1659
  %1661 = vrot.lane.b32.xlu0 %v1639, 19
  %v1662 = vpop.permute.xlu0 %1661
  %1663 = vrot.lane.b32.xlu0 %v1640, 19
  %v1664 = vpop.permute.xlu0 %1663
  %v1665 = vsel %vm581, %v1650, %v1652
  %v1666 = vsel %vm581, %v1652, %v1654
  %v1667 = vsel %vm581, %v1654, %v1656
  %v1668 = vsel %vm581, %v1656, %v1658
  %v1669 = vsel %vm581, %v1658, %v1660
  %v1670 = vsel %vm581, %v1660, %v1662
  %v1671 = vsel %vm581, %v1662, %v1664
  %1681 = vst.msk [vmem:[#allocation2] sm:$0xff] %vm598, %v1650
  %1682 = vst [vmem:[#allocation2 + $0x8] sm:$0xff] %v1665
  %1683 = vst [vmem:[#allocation2 + $0x10] sm:$0xff] %v1666
  %1684 = vst [vmem:[#allocation2 + $0x18] sm:$0xff] %v1667
  %1685 = vst [vmem:[#allocation2 + $0x20] sm:$0xff] %v1668
  %1686 = vst [vmem:[#allocation2 + $0x28] sm:$0xff] %v1669
  %1687 = vst [vmem:[#allocation2 + $0x30] sm:$0xff] %v1670
  %1688 = vst [vmem:[#allocation2 + $0x38] sm:$0xff] %v1671
  %1689 = vst.msk [vmem:[#allocation2 + $0x40] sm:$0xff] %vm581, %v1664
  %v1690 = vld [vmem:[#allocation2] sm:$0xff]
  %v1691 = vld [vmem:[#allocation2 + $0x8] sm:$0xff]
  %v1692 = vld [vmem:[#allocation2 + $0x10] sm:$0xff]
  %v1693 = vld [vmem:[#allocation2 + $0x18] sm:$0xff]
  %v1694 = vld [vmem:[#allocation2 + $0x20] sm:$0xff]
  %v1695 = vld [vmem:[#allocation2 + $0x28] sm:$0xff]
  %v1696 = vld [vmem:[#allocation2 + $0x30] sm:$0xff]
  %v1697 = vld [vmem:[#allocation2 + $0x38] sm:$0xff]
  %v1698 = vld [vmem:[#allocation2] sm:$0xff]
  %v1699 = vld [vmem:[#allocation2 + $0x8] sm:$0xff]
  %v1700 = vld [vmem:[#allocation2 + $0x10] sm:$0xff]
  %v1701 = vld [vmem:[#allocation2 + $0x18] sm:$0xff]
  %v1702 = vld [vmem:[#allocation2 + $0x20] sm:$0xff]
  %v1703 = vld [vmem:[#allocation2 + $0x28] sm:$0xff]
  %v1704 = vld [vmem:[#allocation2 + $0x30] sm:$0xff]
  %v1705 = vld [vmem:[#allocation2 + $0x38] sm:$0xff]
  %v1706 = vld [vmem:[#allocation2 + $0x40] sm:$0xff]
  %1716 = vrot.lane.b32.xlu0 %v1698, 127
  %v1717 = vpop.permute.xlu0 %1716
  %1718 = vrot.lane.b32.xlu0 %v1699, 127
  %v1719 = vpop.permute.xlu0 %1718
  %1720 = vrot.lane.b32.xlu0 %v1700, 127
  %v1721 = vpop.permute.xlu0 %1720
  %1722 = vrot.lane.b32.xlu0 %v1701, 127
  %v1723 = vpop.permute.xlu0 %1722
  %1724 = vrot.lane.b32.xlu0 %v1702, 127
  %v1725 = vpop.permute.xlu0 %1724
  %1726 = vrot.lane.b32.xlu0 %v1703, 127
  %v1727 = vpop.permute.xlu0 %1726
  %1728 = vrot.lane.b32.xlu0 %v1704, 127
  %v1729 = vpop.permute.xlu0 %1728
  %1730 = vrot.lane.b32.xlu0 %v1705, 127
  %v1731 = vpop.permute.xlu0 %1730
  %1732 = vrot.lane.b32.xlu0 %v1706, 127
  %v1733 = vpop.permute.xlu0 %1732
  %v1734 = vsel %vm90, %v1717, %v1719
  %v1735 = vsel %vm90, %v1719, %v1721
  %v1736 = vsel %vm90, %v1721, %v1723
  %v1737 = vsel %vm90, %v1723, %v1725
  %v1738 = vsel %vm90, %v1725, %v1727
  %v1739 = vsel %vm90, %v1727, %v1729
  %v1740 = vsel %vm90, %v1729, %v1731
  %v1741 = vsel %vm90, %v1731, %v1733
  %1750 = vrot.lane.b32.xlu0 %v1698, 126
  %v1751 = vpop.permute.xlu0 %1750
  %1752 = vrot.lane.b32.xlu0 %v1699, 126
  %v1753 = vpop.permute.xlu0 %1752
  %1754 = vrot.lane.b32.xlu0 %v1700, 126
  %v1755 = vpop.permute.xlu0 %1754
  %1756 = vrot.lane.b32.xlu0 %v1701, 126
  %v1757 = vpop.permute.xlu0 %1756
  %1758 = vrot.lane.b32.xlu0 %v1702, 126
  %v1759 = vpop.permute.xlu0 %1758
  %1760 = vrot.lane.b32.xlu0 %v1703, 126
  %v1761 = vpop.permute.xlu0 %1760
  %1762 = vrot.lane.b32.xlu0 %v1704, 126
  %v1763 = vpop.permute.xlu0 %1762
  %1764 = vrot.lane.b32.xlu0 %v1705, 126
  %v1765 = vpop.permute.xlu0 %1764
  %1766 = vrot.lane.b32.xlu0 %v1706, 126
  %v1767 = vpop.permute.xlu0 %1766
  %v1768 = vsel %vm125, %v1751, %v1753
  %v1769 = vsel %vm125, %v1753, %v1755
  %v1770 = vsel %vm125, %v1755, %v1757
  %v1771 = vsel %vm125, %v1757, %v1759
  %v1772 = vsel %vm125, %v1759, %v1761
  %v1773 = vsel %vm125, %v1761, %v1763
  %v1774 = vsel %vm125, %v1763, %v1765
  %v1775 = vsel %vm125, %v1765, %v1767
  %1784 = vrot.lane.b32.xlu0 %v1698, 110
  %v1785 = vpop.permute.xlu0 %1784
  %1786 = vrot.lane.b32.xlu0 %v1699, 110
  %v1787 = vpop.permute.xlu0 %1786
  %1788 = vrot.lane.b32.xlu0 %v1700, 110
  %v1789 = vpop.permute.xlu0 %1788
  %1790 = vrot.lane.b32.xlu0 %v1701, 110
  %v1791 = vpop.permute.xlu0 %1790
  %1792 = vrot.lane.b32.xlu0 %v1702, 110
  %v1793 = vpop.permute.xlu0 %1792
  %1794 = vrot.lane.b32.xlu0 %v1703, 110
  %v1795 = vpop.permute.xlu0 %1794
  %1796 = vrot.lane.b32.xlu0 %v1704, 110
  %v1797 = vpop.permute.xlu0 %1796
  %1798 = vrot.lane.b32.xlu0 %v1705, 110
  %v1799 = vpop.permute.xlu0 %1798
  %1800 = vrot.lane.b32.xlu0 %v1706, 110
  %v1801 = vpop.permute.xlu0 %1800
  %v1802 = vsel %vm160, %v1785, %v1787
  %v1803 = vsel %vm160, %v1787, %v1789
  %v1804 = vsel %vm160, %v1789, %v1791
  %v1805 = vsel %vm160, %v1791, %v1793
  %v1806 = vsel %vm160, %v1793, %v1795
  %v1807 = vsel %vm160, %v1795, %v1797
  %v1808 = vsel %vm160, %v1797, %v1799
  %v1809 = vsel %vm160, %v1799, %v1801
  %1818 = vrot.lane.b32.xlu0 %v1698, 109
  %v1819 = vpop.permute.xlu0 %1818
  %1820 = vrot.lane.b32.xlu0 %v1699, 109
  %v1821 = vpop.permute.xlu0 %1820
  %1822 = vrot.lane.b32.xlu0 %v1700, 109
  %v1823 = vpop.permute.xlu0 %1822
  %1824 = vrot.lane.b32.xlu0 %v1701, 109
  %v1825 = vpop.permute.xlu0 %1824
  %1826 = vrot.lane.b32.xlu0 %v1702, 109
  %v1827 = vpop.permute.xlu0 %1826
  %1828 = vrot.lane.b32.xlu0 %v1703, 109
  %v1829 = vpop.permute.xlu0 %1828
  %1830 = vrot.lane.b32.xlu0 %v1704, 109
  %v1831 = vpop.permute.xlu0 %1830
  %1832 = vrot.lane.b32.xlu0 %v1705, 109
  %v1833 = vpop.permute.xlu0 %1832
  %1834 = vrot.lane.b32.xlu0 %v1706, 109
  %v1835 = vpop.permute.xlu0 %1834
  %v1836 = vsel %vm195, %v1819, %v1821
  %v1837 = vsel %vm195, %v1821, %v1823
  %v1838 = vsel %vm195, %v1823, %v1825
  %v1839 = vsel %vm195, %v1825, %v1827
  %v1840 = vsel %vm195, %v1827, %v1829
  %v1841 = vsel %vm195, %v1829, %v1831
  %v1842 = vsel %vm195, %v1831, %v1833
  %v1843 = vsel %vm195, %v1833, %v1835
  %1852 = vrot.lane.b32.xlu0 %v1698, 108
  %v1853 = vpop.permute.xlu0 %1852
  %1854 = vrot.lane.b32.xlu0 %v1699, 108
  %v1855 = vpop.permute.xlu0 %1854
  %1856 = vrot.lane.b32.xlu0 %v1700, 108
  %v1857 = vpop.permute.xlu0 %1856
  %1858 = vrot.lane.b32.xlu0 %v1701, 108
  %v1859 = vpop.permute.xlu0 %1858
  %1860 = vrot.lane.b32.xlu0 %v1702, 108
  %v1861 = vpop.permute.xlu0 %1860
  %1862 = vrot.lane.b32.xlu0 %v1703, 108
  %v1863 = vpop.permute.xlu0 %1862
  %1864 = vrot.lane.b32.xlu0 %v1704, 108
  %v1865 = vpop.permute.xlu0 %1864
  %1866 = vrot.lane.b32.xlu0 %v1705, 108
  %v1867 = vpop.permute.xlu0 %1866
  %1868 = vrot.lane.b32.xlu0 %v1706, 108
  %v1869 = vpop.permute.xlu0 %1868
  %v1870 = vsel %vm230, %v1853, %v1855
  %v1871 = vsel %vm230, %v1855, %v1857
  %v1872 = vsel %vm230, %v1857, %v1859
  %v1873 = vsel %vm230, %v1859, %v1861
  %v1874 = vsel %vm230, %v1861, %v1863
  %v1875 = vsel %vm230, %v1863, %v1865
  %v1876 = vsel %vm230, %v1865, %v1867
  %v1877 = vsel %vm230, %v1867, %v1869
  %1886 = vrot.lane.b32.xlu0 %v1698, 92
  %v1887 = vpop.permute.xlu0 %1886
  %1888 = vrot.lane.b32.xlu0 %v1699, 92
  %v1889 = vpop.permute.xlu0 %1888
  %1890 = vrot.lane.b32.xlu0 %v1700, 92
  %v1891 = vpop.permute.xlu0 %1890
  %1892 = vrot.lane.b32.xlu0 %v1701, 92
  %v1893 = vpop.permute.xlu0 %1892
  %1894 = vrot.lane.b32.xlu0 %v1702, 92
  %v1895 = vpop.permute.xlu0 %1894
  %1896 = vrot.lane.b32.xlu0 %v1703, 92
  %v1897 = vpop.permute.xlu0 %1896
  %1898 = vrot.lane.b32.xlu0 %v1704, 92
  %v1899 = vpop.permute.xlu0 %1898
  %1900 = vrot.lane.b32.xlu0 %v1705, 92
  %v1901 = vpop.permute.xlu0 %1900
  %1902 = vrot.lane.b32.xlu0 %v1706, 92
  %v1903 = vpop.permute.xlu0 %1902
  %v1904 = vsel %vm265, %v1887, %v1889
  %v1905 = vsel %vm265, %v1889, %v1891
  %v1906 = vsel %vm265, %v1891, %v1893
  %v1907 = vsel %vm265, %v1893, %v1895
  %v1908 = vsel %vm265, %v1895, %v1897
  %v1909 = vsel %vm265, %v1897, %v1899
  %v1910 = vsel %vm265, %v1899, %v1901
  %v1911 = vsel %vm265, %v1901, %v1903
  %1920 = vrot.lane.b32.xlu0 %v1698, 91
  %v1921 = vpop.permute.xlu0 %1920
  %1922 = vrot.lane.b32.xlu0 %v1699, 91
  %v1923 = vpop.permute.xlu0 %1922
  %1924 = vrot.lane.b32.xlu0 %v1700, 91
  %v1925 = vpop.permute.xlu0 %1924
  %1926 = vrot.lane.b32.xlu0 %v1701, 91
  %v1927 = vpop.permute.xlu0 %1926
  %1928 = vrot.lane.b32.xlu0 %v1702, 91
  %v1929 = vpop.permute.xlu0 %1928
  %1930 = vrot.lane.b32.xlu0 %v1703, 91
  %v1931 = vpop.permute.xlu0 %1930
  %1932 = vrot.lane.b32.xlu0 %v1704, 91
  %v1933 = vpop.permute.xlu0 %1932
  %1934 = vrot.lane.b32.xlu0 %v1705, 91
  %v1935 = vpop.permute.xlu0 %1934
  %1936 = vrot.lane.b32.xlu0 %v1706, 91
  %v1937 = vpop.permute.xlu0 %1936
  %v1938 = vsel %vm300, %v1921, %v1923
  %v1939 = vsel %vm300, %v1923, %v1925
  %v1940 = vsel %vm300, %v1925, %v1927
  %v1941 = vsel %vm300, %v1927, %v1929
  %v1942 = vsel %vm300, %v1929, %v1931
  %v1943 = vsel %vm300, %v1931, %v1933
  %v1944 = vsel %vm300, %v1933, %v1935
  %v1945 = vsel %vm300, %v1935, %v1937
  %1954 = vrot.lane.b32.xlu0 %v1698, 90
  %v1955 = vpop.permute.xlu0 %1954
  %1956 = vrot.lane.b32.xlu0 %v1699, 90
  %v1957 = vpop.permute.xlu0 %1956
  %1958 = vrot.lane.b32.xlu0 %v1700, 90
  %v1959 = vpop.permute.xlu0 %1958
  %1960 = vrot.lane.b32.xlu0 %v1701, 90
  %v1961 = vpop.permute.xlu0 %1960
  %1962 = vrot.lane.b32.xlu0 %v1702, 90
  %v1963 = vpop.permute.xlu0 %1962
  %1964 = vrot.lane.b32.xlu0 %v1703, 90
  %v1965 = vpop.permute.xlu0 %1964
  %1966 = vrot.lane.b32.xlu0 %v1704, 90
  %v1967 = vpop.permute.xlu0 %1966
  %1968 = vrot.lane.b32.xlu0 %v1705, 90
  %v1969 = vpop.permute.xlu0 %1968
  %1970 = vrot.lane.b32.xlu0 %v1706, 90
  %v1971 = vpop.permute.xlu0 %1970
  %v1972 = vsel %vm335, %v1955, %v1957
  %v1973 = vsel %vm335, %v1957, %v1959
  %v1974 = vsel %vm335, %v1959, %v1961
  %v1975 = vsel %vm335, %v1961, %v1963
  %v1976 = vsel %vm335, %v1963, %v1965
  %v1977 = vsel %vm335, %v1965, %v1967
  %v1978 = vsel %vm335, %v1967, %v1969
  %v1979 = vsel %vm335, %v1969, %v1971
  %v1988 = vpack.c.bf16 %v1734, %v1690
  %v1989 = vpack.c.bf16 %v1735, %v1691
  %v1990 = vpack.c.bf16 %v1736, %v1692
  %v1991 = vpack.c.bf16 %v1737, %v1693
  %v1992 = vpack.c.bf16 %v1738, %v1694
  %v1993 = vpack.c.bf16 %v1739, %v1695
  %v1994 = vpack.c.bf16 %v1740, %v1696
  %v1995 = vpack.c.bf16 %v1741, %v1697
  %v1996 = vpack.c.bf16 %v1802, %v1768
  %v1997 = vpack.c.bf16 %v1803, %v1769
  %v1998 = vpack.c.bf16 %v1804, %v1770
  %v1999 = vpack.c.bf16 %v1805, %v1771
  %v2000 = vpack.c.bf16 %v1806, %v1772
  %v2001 = vpack.c.bf16 %v1807, %v1773
  %v2002 = vpack.c.bf16 %v1808, %v1774
  %v2003 = vpack.c.bf16 %v1809, %v1775
  %v2004 = vpack.c.bf16 %v1870, %v1836
  %v2005 = vpack.c.bf16 %v1871, %v1837
  %v2006 = vpack.c.bf16 %v1872, %v1838
  %v2007 = vpack.c.bf16 %v1873, %v1839
  %v2008 = vpack.c.bf16 %v1874, %v1840
  %v2009 = vpack.c.bf16 %v1875, %v1841
  %v2010 = vpack.c.bf16 %v1876, %v1842
  %v2011 = vpack.c.bf16 %v1877, %v1843
  %v2012 = vpack.c.bf16 %v1938, %v1904
  %v2013 = vpack.c.bf16 %v1939, %v1905
  %v2014 = vpack.c.bf16 %v1940, %v1906
  %v2015 = vpack.c.bf16 %v1941, %v1907
  %v2016 = vpack.c.bf16 %v1942, %v1908
  %v2017 = vpack.c.bf16 %v1943, %v1909
  %v2018 = vpack.c.bf16 %v1944, %v1910
  %v2019 = vpack.c.bf16 %v1945, %v1911
  %v2020 = vpack.c.bf16 %v1972, %v1972
  %v2021 = vpack.c.bf16 %v1973, %v1973
  %v2022 = vpack.c.bf16 %v1974, %v1974
  %v2023 = vpack.c.bf16 %v1975, %v1975
  %v2024 = vpack.c.bf16 %v1976, %v1976
  %v2025 = vpack.c.bf16 %v1977, %v1977
  %v2026 = vpack.c.bf16 %v1978, %v1978
  %v2027 = vpack.c.bf16 %v1979, %v1979
  %v2028 = vld [vmem:[%s8] sm:$0xf]
  %v2029 = vld [vmem:[%s8 + $0x4] sm:$0x3]
  %v2030 = vld [vmem:[%s9] sm:$0xff]
  %v2031 = vld [vmem:[%s9 + $0x8] sm:$0xf]
  %2033 = vset.pattern.permute.xlu0 0
  %2034 = vperm.xlu0 %2033, %v2030
  %v2035 = vpop.permute.xlu0 %2034
  %2038 = vset.pattern.permute.xlu0 0
  %2039 = vperm.xlu0 %2038, %v2031
  %v2040 = vpop.permute.xlu0 %2039
  %v2044 = vunpack.c.l.b16 %v2028
  %v2045 = vunpack.c.l.b16 %v2029
  %v2046 = vpack.c.b16 %v2045, %v2044
  %v2048 = vsel %vm399, %v2046, 0
  %v2051 = vsel %vm403, %v2020, 0
  %v2054 = vsel %vm403, %v2021, 0
  %v2057 = vsel %vm403, %v2022, 0
  %v2060 = vsel %vm403, %v2023, 0
  %v2063 = vsel %vm403, %v2024, 0
  %v2066 = vsel %vm403, %v2025, 0
  %v2069 = vsel %vm403, %v2026, 0
  %v2072 = vsel %vm403, %v2027, 0
  %2074 = vmatpush.bf16.msra.mxu0 0
  %2075 = vmatpush.bf16.msra.mxu0 0
  %2076 = vmatpush.bf16.msra.mxu0 0
  %2077 = vmatpush.bf16.msra.mxu0 %v2051
  %2078 = vmatpush.bf16.msra.mxu0 %v2012
  %2079 = vmatpush.bf16.msra.mxu0 %v2004
  %2080 = vmatpush.bf16.msra.mxu0 %v1996
  %2081 = vmatpush.bf16.msra.mxu0 %v1988
  %2082 = vmatmul.bf16.gmra.mxu0 %v2048
  %v2083 = vpop.f32.mrf.mxu0
  %v2084 = vadd.f32 %v2035, %v2083
  %v2085 = vpop.f32.mrf.mxu0
  %v2086 = vadd.f32 %v2040, %v2085
  %2087 = vdwg.mxu0
  %2088 = vmatpush.bf16.msra.mxu0 0
  %2089 = vmatpush.bf16.msra.mxu0 0
  %2090 = vmatpush.bf16.msra.mxu0 0
  %2091 = vmatpush.bf16.msra.mxu0 %v2054
  %2092 = vmatpush.bf16.msra.mxu0 %v2013
  %2093 = vmatpush.bf16.msra.mxu0 %v2005
  %2094 = vmatpush.bf16.msra.mxu0 %v1997
  %2095 = vmatpush.bf16.msra.mxu0 %v1989
  %2096 = vmatmul.bf16.gmra.mxu0 %v2048
  %v2097 = vpop.f32.mrf.mxu0
  %v2098 = vadd.f32 %v2035, %v2097
  %v2099 = vpop.f32.mrf.mxu0
  %v2100 = vadd.f32 %v2040, %v2099
  %2101 = vdwg.mxu0
  %2102 = vmatpush.bf16.msra.mxu0 0
  %2103 = vmatpush.bf16.msra.mxu0 0
  %2104 = vmatpush.bf16.msra.mxu0 0
  %2105 = vmatpush.bf16.msra.mxu0 %v2057
  %2106 = vmatpush.bf16.msra.mxu0 %v2014
  %2107 = vmatpush.bf16.msra.mxu0 %v2006
  %2108 = vmatpush.bf16.msra.mxu0 %v1998
  %2109 = vmatpush.bf16.msra.mxu0 %v1990
  %2110 = vmatmul.bf16.gmra.mxu0 %v2048
  %v2111 = vpop.f32.mrf.mxu0
  %v2112 = vadd.f32 %v2035, %v2111
  %v2113 = vpop.f32.mrf.mxu0
  %v2114 = vadd.f32 %v2040, %v2113
  %2115 = vdwg.mxu0
  %2116 = vmatpush.bf16.msra.mxu0 0
  %2117 = vmatpush.bf16.msra.mxu0 0
  %2118 = vmatpush.bf16.msra.mxu0 0
  %2119 = vmatpush.bf16.msra.mxu0 %v2060
  %2120 = vmatpush.bf16.msra.mxu0 %v2015
  %2121 = vmatpush.bf16.msra.mxu0 %v2007
  %2122 = vmatpush.bf16.msra.mxu0 %v1999
  %2123 = vmatpush.bf16.msra.mxu0 %v1991
  %2124 = vmatmul.bf16.gmra.mxu0 %v2048
  %v2125 = vpop.f32.mrf.mxu0
  %v2126 = vadd.f32 %v2035, %v2125
  %v2127 = vpop.f32.mrf.mxu0
  %v2128 = vadd.f32 %v2040, %v2127
  %2129 = vdwg.mxu0
  %2130 = vmatpush.bf16.msra.mxu0 0
  %2131 = vmatpush.bf16.msra.mxu0 0
  %2132 = vmatpush.bf16.msra.mxu0 0
  %2133 = vmatpush.bf16.msra.mxu0 %v2063
  %2134 = vmatpush.bf16.msra.mxu0 %v2016
  %2135 = vmatpush.bf16.msra.mxu0 %v2008
  %2136 = vmatpush.bf16.msra.mxu0 %v2000
  %2137 = vmatpush.bf16.msra.mxu0 %v1992
  %2138 = vmatmul.bf16.gmra.mxu0 %v2048
  %v2139 = vpop.f32.mrf.mxu0
  %v2140 = vadd.f32 %v2035, %v2139
  %v2141 = vpop.f32.mrf.mxu0
  %v2142 = vadd.f32 %v2040, %v2141
  %2143 = vdwg.mxu0
  %2144 = vmatpush.bf16.msra.mxu0 0
  %2145 = vmatpush.bf16.msra.mxu0 0
  %2146 = vmatpush.bf16.msra.mxu0 0
  %2147 = vmatpush.bf16.msra.mxu0 %v2066
  %2148 = vmatpush.bf16.msra.mxu0 %v2017
  %2149 = vmatpush.bf16.msra.mxu0 %v2009
  %2150 = vmatpush.bf16.msra.mxu0 %v2001
  %2151 = vmatpush.bf16.msra.mxu0 %v1993
  %2152 = vmatmul.bf16.gmra.mxu0 %v2048
  %v2153 = vpop.f32.mrf.mxu0
  %v2154 = vadd.f32 %v2035, %v2153
  %v2155 = vpop.f32.mrf.mxu0
  %v2156 = vadd.f32 %v2040, %v2155
  %2157 = vdwg.mxu0
  %2158 = vmatpush.bf16.msra.mxu0 0
  %2159 = vmatpush.bf16.msra.mxu0 0
  %2160 = vmatpush.bf16.msra.mxu0 0
  %2161 = vmatpush.bf16.msra.mxu0 %v2069
  %2162 = vmatpush.bf16.msra.mxu0 %v2018
  %2163 = vmatpush.bf16.msra.mxu0 %v2010
  %2164 = vmatpush.bf16.msra.mxu0 %v2002
  %2165 = vmatpush.bf16.msra.mxu0 %v1994
  %2166 = vmatmul.bf16.gmra.mxu0 %v2048
  %v2167 = vpop.f32.mrf.mxu0
  %v2168 = vadd.f32 %v2035, %v2167
  %v2169 = vpop.f32.mrf.mxu0
  %v2170 = vadd.f32 %v2040, %v2169
  %2171 = vdwg.mxu0
  %2172 = vmatpush.bf16.msra.mxu0 0
  %2173 = vmatpush.bf16.msra.mxu0 0
  %2174 = vmatpush.bf16.msra.mxu0 0
  %2175 = vmatpush.bf16.msra.mxu0 %v2072
  %2176 = vmatpush.bf16.msra.mxu0 %v2019
  %2177 = vmatpush.bf16.msra.mxu0 %v2011
  %2178 = vmatpush.bf16.msra.mxu0 %v2003
  %2179 = vmatpush.bf16.msra.mxu0 %v1995
  %2180 = vmatmul.bf16.gmra.mxu0 %v2048
  %v2181 = vpop.f32.mrf.mxu0
  %v2182 = vadd.f32 %v2035, %v2181
  %v2183 = vpop.f32.mrf.mxu0
  %v2184 = vadd.f32 %v2040, %v2183
  %2185 = vdwg.mxu0
  %v2186 = vmul.f32 %v2084, %v533
  %v2187 = vmul.f32 %v2098, %v534
  %v2188 = vmul.f32 %v2112, %v535
  %v2189 = vmul.f32 %v2126, %v536
  %v2190 = vmul.f32 %v2140, %v537
  %v2191 = vmul.f32 %v2154, %v538
  %v2192 = vmul.f32 %v2168, %v539
  %v2193 = vmul.f32 %v2182, %v540
  %v2194 = vmul.f32 %v2086, %v533
  %v2195 = vmul.f32 %v2100, %v534
  %v2196 = vmul.f32 %v2114, %v535
  %v2197 = vmul.f32 %v2128, %v536
  %v2198 = vmul.f32 %v2142, %v537
  %v2199 = vmul.f32 %v2156, %v538
  %v2200 = vmul.f32 %v2170, %v539
  %v2201 = vmul.f32 %v2184, %v540
  %2202 = vst [vmem:[%s10] sm:$0xff] %v2186
  %2203 = vst [vmem:[%s10 + $0x8] sm:$0xff] %v2187
  %2204 = vst [vmem:[%s10 + $0x10] sm:$0xff] %v2188
  %2205 = vst [vmem:[%s10 + $0x18] sm:$0xff] %v2189
  %2206 = vst [vmem:[%s10 + $0x20] sm:$0xff] %v2190
  %2207 = vst [vmem:[%s10 + $0x28] sm:$0xff] %v2191
  %2208 = vst [vmem:[%s10 + $0x30] sm:$0xff] %v2192
  %2209 = vst [vmem:[%s10 + $0x38] sm:$0xff] %v2193
  %2210 = vst [vmem:[%s10 + $0x40] sm:$0xf] %v2194
  %2211 = vst [vmem:[%s10 + $0x48] sm:$0xf] %v2195
  %2212 = vst [vmem:[%s10 + $0x50] sm:$0xf] %v2196
  %2213 = vst [vmem:[%s10 + $0x58] sm:$0xf] %v2197
  %2214 = vst [vmem:[%s10 + $0x60] sm:$0xf] %v2198
  %2215 = vst [vmem:[%s10 + $0x68] sm:$0xf] %v2199
  %2216 = vst [vmem:[%s10 + $0x70] sm:$0xf] %v2200
  %2217 = vst [vmem:[%s10 + $0x78] sm:$0xf] %v2201
  // Predicated region
  $region42: #{sr_model_forward.1} parent=0 // pred_check
    _
  $region43: #{sr_model_forward.1} parent=0 // pred_check_branch
    %2219 = sbr.rel (0) target = $region45
  $region44: #{sr_model_forward.1} parent=0 // pred_region
    _
  $region45: #{sr_model_forward.1} parent=0 // pred_fallthru
    _
  // Predicated region
  $region46: #{sr_model_forward.1} parent=0 // pred_check
    _
  $region47: #{sr_model_forward.1} parent=0 // pred_check_branch
    %2221 = sbr.rel (0) target = $region49
  $region48: #{sr_model_forward.1} parent=0 // pred_region
    _
  $region49: #{sr_model_forward.1} parent=0 // pred_fallthru
    _

</llo_original>
